<compile_context>
chip_gen: v7x
topology: tpu7x:2x2x1
jax: 0.10.0
libtpu: 0.0.40
codegen_flags: <defaults>
</compile_context>

<pallas_src>
import functools
import math

import jax
import jax.numpy as jnp
from jax.experimental import pallas as pl
from jax.experimental.pallas import tpu as pltpu

NUM_CLASSES = 4
OUT_PAD = 128          # lane-dense padded class dim (wrapper slices back to 4)
NEG_BIG = -1e30        # padded-class bias; vanishes under softmax


def convnet_kernel(x_ref, convw_ref, convb_ref,
                   w1_ref, b1_ref, w2_ref, b2_ref, w3_ref, b3_ref,
                   out_ref, pool_ref, *,
                   n_tile, t_chunk, n_t_chunks, f_chunk, window, e_pad, t_valid):
    feat = convw_ref.shape[-1]
    n_f_chunks = feat // f_chunk
    m = n_tile * t_chunk

    # ---- conv + relu + fused max-pool: T chunks outer, F chunks inner ----
    for ti in range(n_t_chunks):                       # static, fully unrolled
        t0 = ti * t_chunk

        # im2col lhs: W shifted static slices of the resident x block, merged
        # along lanes -> one (M, W*E_pad) bf16 operand shared by all F chunks.
        taps = [x_ref[:, t0 + w: t0 + w + t_chunk, :].reshape(m, e_pad)
                for w in range(window)]
        lhs = jnp.concatenate(taps, axis=-1)           # (M, W*E_pad)

        # Only the (statically-known) last, partial T chunk needs masking.
        need_mask = (ti == n_t_chunks - 1) and (t_valid - t0 < t_chunk)
        if need_mask:
            k_iota = jax.lax.broadcasted_iota(jnp.int32, (1, t_chunk, 1), 1)
            mask = k_iota < (t_valid - t0)

        for fi in range(n_f_chunks):                   # static, fully unrolled
            f0 = fi * f_chunk
            d = jnp.dot(lhs, convw_ref[:, f0:f0 + f_chunk],
                        preferred_element_type=jnp.float32)          # (M, fc) f32
            conv = jnp.maximum(d + convb_ref[:, f0:f0 + f_chunk], 0.0)
            conv = conv.reshape(n_tile, t_chunk, f_chunk)
            if need_mask:
                # post-ReLU values are >= 0, so 0 is the max-identity for pad rows
                conv = jnp.where(mask, conv, 0.0)
            cmax = jnp.max(conv, axis=1)                              # (n_tile, fc)
            if ti == 0:
                pool_ref[:, f0:f0 + f_chunk] = cmax
            else:
                pool_ref[:, f0:f0 + f_chunk] = jnp.maximum(
                    pool_ref[:, f0:f0 + f_chunk], cmax)

    # ---- MLP head + log_softmax (runs once per batch tile) ----
    # TODO(synk): dropout1/2/3 omitted (identity in eval/inference mode).
    pooled = pool_ref[...]                                            # (n_tile, F) f32
    h1 = jnp.maximum(
        jnp.dot(pooled.astype(jnp.bfloat16), w1_ref[...],
                preferred_element_type=jnp.float32) + b1_ref[...], 0.0)
    h2 = jnp.maximum(
        jnp.dot(h1.astype(jnp.bfloat16), w2_ref[...],
                preferred_element_type=jnp.float32) + b2_ref[...], 0.0)
    logits = (jnp.dot(h2.astype(jnp.bfloat16), w3_ref[...],
                      preferred_element_type=jnp.float32) + b3_ref[...])
    # log_softmax over the class dim (padded cols carry -1e30 bias -> exp == 0)
    mx = jnp.max(logits, axis=-1, keepdims=True)
    shifted = logits - mx
    lse = jnp.log(jnp.sum(jnp.exp(shifted), axis=-1, keepdims=True))
    out_ref[...] = shifted - lse                                      # (n_tile, OUT_PAD)


@functools.partial(jax.jit,
                   static_argnames=("window", "n_tile", "t_chunk", "f_chunk"))
def convnet_forward(x, params, *, window, n_tile=8, t_chunk=32, f_chunk=512):
    """x: (N, 1, H, E) float32 (NCHW as in PyTorch). Returns (N, 4) log-probs."""
    n, c, h, e = x.shape
    assert c == 1
    t = h - window + 1
    assert t >= 1

    convw, convb, w1, b1, w2, b2, w3p, b3p = params
    feat = convw.shape[-1]
    e_pad = convw.shape[0] // window          # convw is pre-flattened (W*E_pad, F)
    assert e <= e_pad

    f_chunk = min(f_chunk, feat)
    assert feat % f_chunk == 0

    # Clamp the T chunk for tiny sequences (keep it a sublane multiple of 8);
    # default n_tile*t_chunk = 256 fills the v6e/v7x MXU (128-multiple for v5e).
    t_chunk = max(8, min(t_chunk, ((t + 7) // 8) * 8))
    n_t_chunks = -(-t // t_chunk)
    t_pad = n_t_chunks * t_chunk

    n_pad = -(-n // n_tile) * n_tile
    h_pad = ((t_pad + window - 1 + 7) // 8) * 8          # sublane-aligned window

    # pad batch / rows / embedding; padded rows are masked in-kernel, padded
    # batch rows are sliced off below, padded E lanes are zero in x and convw.
    xs = jnp.pad(x[:, 0], ((0, n_pad - n), (0, h_pad - h), (0, e_pad - e)))
    xs = xs.astype(jnp.bfloat16)                         # halve HBM->VMEM traffic

    grid = (n_pad // n_tile,)
    kernel = functools.partial(
        convnet_kernel, n_tile=n_tile, t_chunk=t_chunk, n_t_chunks=n_t_chunks,
        f_chunk=f_chunk, window=window, e_pad=e_pad, t_valid=t)

    def wspec(shape):
        # constant index_map -> DMA'd once, stays VMEM-resident across the grid
        return pl.BlockSpec(shape, lambda i: (0,) * len(shape))

    out = pl.pallas_call(
        kernel,
        out_shape=jax.ShapeDtypeStruct((n_pad, OUT_PAD), jnp.float32),
        grid_spec=pltpu.PrefetchScalarGridSpec(
            num_scalar_prefetch=0,
            grid=grid,
            in_specs=[
                pl.BlockSpec((n_tile, h_pad, e_pad), lambda i: (i, 0, 0)),
                wspec((window * e_pad, feat)),
                wspec((1, feat)),
                wspec((feat, 256)),
                wspec((1, 256)),
                wspec((256, 32)),
                wspec((1, 32)),
                wspec((32, OUT_PAD)),
                wspec((1, OUT_PAD)),
            ],
            out_specs=pl.BlockSpec((n_tile, OUT_PAD), lambda i: (i, 0)),
            scratch_shapes=[pltpu.VMEM((n_tile, feat), jnp.float32)],
        ),
        compiler_params=pltpu.CompilerParams(
            dimension_semantics=("parallel",),
            vmem_limit_bytes=32 * 1024 * 1024,
        ),
    )(xs, convw, convb, w1, b1, w2, b2, w3p, b3p)

    return out[:n, :NUM_CLASSES]


def init_params(key, *, window, embed, features):
    """Deterministic init mirroring the PyTorch module.
    conv weight (F,1,W,E) is stored flat as (W*E_pad, F) for im2col (E zero-padded
    to a 128 multiple); Linear weights as (in, out); fc3 weight/bias are lane-padded
    to 128 classes (zero cols / -1e30 bias)."""
    keys = jax.random.split(key, 8)
    k = window * embed
    e_pad = ((embed + 127) // 128) * 128

    def u(kk, shape, fan_in):
        bound = 1.0 / math.sqrt(fan_in)
        return jax.random.uniform(kk, shape, jnp.float32, -bound, bound)

    convw = u(keys[0], (window, embed, features), k)
    convw = jnp.pad(convw, ((0, 0), (0, e_pad - embed), (0, 0)))
    convw_flat = convw.reshape(window * e_pad, features).astype(jnp.bfloat16)
    convb = u(keys[1], (1, features), k)
    w1 = u(keys[2], (features, 256), features).astype(jnp.bfloat16)
    b1 = u(keys[3], (1, 256), features)
    w2 = u(keys[4], (256, 32), 256).astype(jnp.bfloat16)
    b2 = u(keys[5], (1, 32), 256)
    w3 = u(keys[6], (32, NUM_CLASSES), 32)
    b3 = u(keys[7], (1, NUM_CLASSES), 32)
    w3p = jnp.pad(w3, ((0, 0), (0, OUT_PAD - NUM_CLASSES))).astype(jnp.bfloat16)
    b3p = jnp.pad(b3, ((0, 0), (0, OUT_PAD - NUM_CLASSES)), constant_values=NEG_BIG)
    return (convw_flat, convb, w1, b1, w2, b2, w3p, b3p)


def reference_forward(x, params, *, window):
    """Pure-JAX reference on the same bf16-rounded operands (f32 math)."""
    convw_flat, convb, w1, b1, w2, b2, w3p, b3p = [
        p.astype(jnp.float32) for p in params]
    feat = convw_flat.shape[-1]
    e_pad = convw_flat.shape[0] // window
    convw = convw_flat.reshape(window, e_pad, feat)
    xs = x[:, 0]
    n, h, e = xs.shape
    xs = jnp.pad(xs, ((0, 0), (0, 0), (0, e_pad - e)))
    xs = xs.astype(jnp.bfloat16).astype(jnp.float32)
    t = h - window + 1
    hp = jax.lax.Precision.HIGHEST
    conv = None
    for w in range(window):
        d = jnp.einsum("nte,ef->ntf", xs[:, w:w + t, :], convw[w], precision=hp)
        conv = d if conv is None else conv + d
    conv = jnp.maximum(conv + convb, 0.0)
    pooled = conv.max(axis=1)
    h1 = jnp.maximum(jnp.dot(pooled, w1, precision=hp) + b1, 0.0)
    h2 = jnp.maximum(jnp.dot(h1, w2, precision=hp) + b2, 0.0)
    logits = jnp.dot(h2, w3p[:, :NUM_CLASSES], precision=hp) + b3p[:, :NUM_CLASSES]
    m = logits.max(axis=-1, keepdims=True)
    shifted = logits - m
    return shifted - jnp.log(jnp.exp(shifted).sum(axis=-1, keepdims=True))


if __name__ == "__main__":
    # Small, module-consistent shapes: batch=2, seq=16, embed=32 (stands in for
    # the hardcoded 300 -> padded to 128 lanes), WINDOW=5, FEATURES=128 (stands
    # in for 1024).  T = 12 -> one in-kernel T chunk of 16 (M = 8*16 = 128).
    N, H, E = 2, 16, 32
    WINDOW, FEATURES = 5, 128

    key = jax.random.PRNGKey(0)
    kx, kp = jax.random.split(key)
    x = jax.random.normal(kx, (N, 1, H, E), dtype=jnp.float32)
    params = init_params(kp, window=WINDOW, embed=E, features=FEATURES)

    out = convnet_forward(x, params, window=WINDOW)
    out = jax.block_until_ready(out)

    assert out.shape == (N, NUM_CLASSES)
    # log_softmax rows exponentiate-sum to 1
    assert jnp.allclose(jnp.exp(out).sum(axis=-1), 1.0, atol=1e-4)
    # matches the pure-JAX reference on the same bf16-rounded operands
    ref = reference_forward(x, params, window=WINDOW)
    assert jnp.allclose(out, ref, atol=1e-2), (out, ref)
    print("KERNEL_OK")
</pallas_src>

<mosaic_0001>
module attributes {stable_mosaic.version = 11 : i64} {
  func.func @convnet_kernel(%arg0: i32, %arg1: memref<8x24x128xbf16, #tpu.memory_space<vmem>>, %arg2: memref<640x128xbf16, #tpu.memory_space<vmem>>, %arg3: memref<1x128xf32, #tpu.memory_space<vmem>>, %arg4: memref<128x256xbf16, #tpu.memory_space<vmem>>, %arg5: memref<1x256xf32, #tpu.memory_space<vmem>>, %arg6: memref<256x32xbf16, #tpu.memory_space<vmem>>, %arg7: memref<1x32xf32, #tpu.memory_space<vmem>>, %arg8: memref<32x128xbf16, #tpu.memory_space<vmem>>, %arg9: memref<1x128xf32, #tpu.memory_space<vmem>>, %arg10: memref<8x128xf32, #tpu.memory_space<vmem>>, %arg11: memref<8x128xf32, #tpu.memory_space<vmem>>) attributes {dimension_semantics = [#tpu.dimension_semantics<parallel>], iteration_bounds = array<i64: 1>, scalar_prefetch = 0 : i64, scratch_operands = 1 : i64, tpu.core_type = #tpu.core_type<tc>, window_params = [{transform_indices = @transform_0, window_bounds = array<i64: 8, 24, 128>}, {pipeline_mode = #tpu.pipeline_mode<synchronous>, transform_indices = @transform_1, window_bounds = array<i64: 640, 128>}, {pipeline_mode = #tpu.pipeline_mode<synchronous>, transform_indices = @transform_2, window_bounds = array<i64: 1, 128>}, {pipeline_mode = #tpu.pipeline_mode<synchronous>, transform_indices = @transform_3, window_bounds = array<i64: 128, 256>}, {pipeline_mode = #tpu.pipeline_mode<synchronous>, transform_indices = @transform_4, window_bounds = array<i64: 1, 256>}, {pipeline_mode = #tpu.pipeline_mode<synchronous>, transform_indices = @transform_5, window_bounds = array<i64: 256, 32>}, {pipeline_mode = #tpu.pipeline_mode<synchronous>, transform_indices = @transform_6, window_bounds = array<i64: 1, 32>}, {pipeline_mode = #tpu.pipeline_mode<synchronous>, transform_indices = @transform_7, window_bounds = array<i64: 32, 128>}, {pipeline_mode = #tpu.pipeline_mode<synchronous>, transform_indices = @transform_8, window_bounds = array<i64: 1, 128>}, {transform_indices = @transform_9, window_bounds = array<i64: 8, 128>}]} {
    %c0 = arith.constant 0 : index
    %c0_0 = arith.constant 0 : index
    %c0_1 = arith.constant 0 : index
    %0 = vector.load %arg1[%c0, %c0_0, %c0_1] : memref<8x24x128xbf16, #tpu.memory_space<vmem>>, vector<8x16x128xbf16>
    %1 = vector.shape_cast %0 : vector<8x16x128xbf16> to vector<128x128xbf16>
    %c0_2 = arith.constant 0 : index
    %c1 = arith.constant 1 : index
    %c0_3 = arith.constant 0 : index
    %2 = vector.load %arg1[%c0_2, %c1, %c0_3] : memref<8x24x128xbf16, #tpu.memory_space<vmem>>, vector<8x16x128xbf16>
    %3 = vector.shape_cast %2 : vector<8x16x128xbf16> to vector<128x128xbf16>
    %c0_4 = arith.constant 0 : index
    %c2 = arith.constant 2 : index
    %c0_5 = arith.constant 0 : index
    %4 = vector.load %arg1[%c0_4, %c2, %c0_5] : memref<8x24x128xbf16, #tpu.memory_space<vmem>>, vector<8x16x128xbf16>
    %5 = vector.shape_cast %4 : vector<8x16x128xbf16> to vector<128x128xbf16>
    %c0_6 = arith.constant 0 : index
    %c3 = arith.constant 3 : index
    %c0_7 = arith.constant 0 : index
    %6 = vector.load %arg1[%c0_6, %c3, %c0_7] : memref<8x24x128xbf16, #tpu.memory_space<vmem>>, vector<8x16x128xbf16>
    %7 = vector.shape_cast %6 : vector<8x16x128xbf16> to vector<128x128xbf16>
    %c0_8 = arith.constant 0 : index
    %c4 = arith.constant 4 : index
    %c0_9 = arith.constant 0 : index
    %8 = vector.load %arg1[%c0_8, %c4, %c0_9] : memref<8x24x128xbf16, #tpu.memory_space<vmem>>, vector<8x16x128xbf16>
    %9 = vector.shape_cast %8 : vector<8x16x128xbf16> to vector<128x128xbf16>
    %10 = tpu.concatenate %1, %3, %5, %7, %9 in 1 : vector<128x128xbf16>, vector<128x128xbf16>, vector<128x128xbf16>, vector<128x128xbf16>, vector<128x128xbf16> -> vector<128x640xbf16>
    %11 = tpu.iota {dimensions = array<i32: 1>} : vector<1x16x1xi32>
    %c12_i32 = arith.constant 12 : i32
    %12 = vector.broadcast %c12_i32 : i32 to vector<1x16x1xi32>
    %13 = arith.cmpi slt, %11, %12 : vector<1x16x1xi32>
    %c0_10 = arith.constant 0 : index
    %c0_11 = arith.constant 0 : index
    %14 = vector.load %arg2[%c0_10, %c0_11] : memref<640x128xbf16, #tpu.memory_space<vmem>>, vector<640x128xbf16>
    %cst = arith.constant dense<0.000000e+00> : vector<128x128xf32>
    %15 = tpu.matmul %10, %14, %cst {dimension_numbers = #tpu.dot_dimension_numbers<[1], [0], [0], [1], [0, 0, 1, 1], [], []>} : vector<128x640xbf16>, vector<640x128xbf16>, vector<128x128xf32> -> vector<128x128xf32>
    %c0_12 = arith.constant 0 : index
    %c0_13 = arith.constant 0 : index
    %16 = vector.load %arg3[%c0_12, %c0_13] : memref<1x128xf32, #tpu.memory_space<vmem>>, vector<1x128xf32>
    %17 = vector.broadcast %16 : vector<1x128xf32> to vector<128x128xf32>
    %18 = arith.addf %15, %17 : vector<128x128xf32>
    %cst_14 = arith.constant 0.000000e+00 : f32
    %19 = vector.broadcast %cst_14 : f32 to vector<128x128xf32>
    %20 = arith.maximumf %18, %19 : vector<128x128xf32>
    %21 = vector.shape_cast %20 : vector<128x128xf32> to vector<8x16x128xf32>
    %cst_15 = arith.constant 0.000000e+00 : f32
    %22 = vector.shape_cast %13 : vector<1x16x1xi1> to vector<1x16x1xi1>
    %23 = vector.broadcast %22 : vector<1x16x1xi1> to vector<8x16x128xi1>
    %24 = vector.broadcast %cst_15 : f32 to vector<8x16x128xf32>
    %25 = arith.select %23, %21, %24 : vector<8x16x128xi1>, vector<8x16x128xf32>
    %cst_16 = arith.constant dense<0xFF800000> : vector<8x128xf32>
    %26 = vector.multi_reduction <maximumf>, %25, %cst_16 [1] : vector<8x16x128xf32> to vector<8x128xf32>
    %c0_17 = arith.constant 0 : index
    %c0_18 = arith.constant 0 : index
    %27 = vector.load %arg11[%c0_17, %c0_18] : memref<8x128xf32, #tpu.memory_space<vmem>>, vector<8x128xf32>
    tpu.vector_store %arg11[%c0_17, %c0_18], %26 {strides = array<i32>} : memref<8x128xf32, #tpu.memory_space<vmem>>, vector<8x128xf32>,
    %c0_19 = arith.constant 0 : index
    %c0_20 = arith.constant 0 : index
    %28 = vector.load %arg11[%c0_19, %c0_20] : memref<8x128xf32, #tpu.memory_space<vmem>>, vector<8x128xf32>
    %29 = arith.truncf %28 : vector<8x128xf32> to vector<8x128xbf16>
    %c0_21 = arith.constant 0 : index
    %c0_22 = arith.constant 0 : index
    %30 = vector.load %arg4[%c0_21, %c0_22] : memref<128x256xbf16, #tpu.memory_space<vmem>>, vector<128x256xbf16>
    %cst_23 = arith.constant dense<0.000000e+00> : vector<8x256xf32>
    %31 = tpu.matmul %29, %30, %cst_23 {dimension_numbers = #tpu.dot_dimension_numbers<[1], [0], [0], [1], [0, 0, 1, 1], [], []>} : vector<8x128xbf16>, vector<128x256xbf16>, vector<8x256xf32> -> vector<8x256xf32>
    %c0_24 = arith.constant 0 : index
    %c0_25 = arith.constant 0 : index
    %32 = vector.load %arg5[%c0_24, %c0_25] : memref<1x256xf32, #tpu.memory_space<vmem>>, vector<1x256xf32>
    %33 = vector.broadcast %32 : vector<1x256xf32> to vector<8x256xf32>
    %34 = arith.addf %31, %33 : vector<8x256xf32>
    %cst_26 = arith.constant 0.000000e+00 : f32
    %35 = vector.broadcast %cst_26 : f32 to vector<8x256xf32>
    %36 = arith.maximumf %34, %35 : vector<8x256xf32>
    %37 = arith.truncf %36 : vector<8x256xf32> to vector<8x256xbf16>
    %c0_27 = arith.constant 0 : index
    %c0_28 = arith.constant 0 : index
    %38 = vector.load %arg6[%c0_27, %c0_28] : memref<256x32xbf16, #tpu.memory_space<vmem>>, vector<256x32xbf16>
    %cst_29 = arith.constant dense<0.000000e+00> : vector<8x32xf32>
    %39 = tpu.matmul %37, %38, %cst_29 {dimension_numbers = #tpu.dot_dimension_numbers<[1], [0], [0], [1], [0, 0, 1, 1], [], []>} : vector<8x256xbf16>, vector<256x32xbf16>, vector<8x32xf32> -> vector<8x32xf32>
    %c0_30 = arith.constant 0 : index
    %c0_31 = arith.constant 0 : index
    %40 = vector.load %arg7[%c0_30, %c0_31] : memref<1x32xf32, #tpu.memory_space<vmem>>, vector<1x32xf32>
    %41 = vector.broadcast %40 : vector<1x32xf32> to vector<8x32xf32>
    %42 = arith.addf %39, %41 : vector<8x32xf32>
    %cst_32 = arith.constant 0.000000e+00 : f32
    %43 = vector.broadcast %cst_32 : f32 to vector<8x32xf32>
    %44 = arith.maximumf %42, %43 : vector<8x32xf32>
    %45 = arith.truncf %44 : vector<8x32xf32> to vector<8x32xbf16>
    %c0_33 = arith.constant 0 : index
    %c0_34 = arith.constant 0 : index
    %46 = vector.load %arg8[%c0_33, %c0_34] : memref<32x128xbf16, #tpu.memory_space<vmem>>, vector<32x128xbf16>
    %cst_35 = arith.constant dense<0.000000e+00> : vector<8x128xf32>
    %47 = tpu.matmul %45, %46, %cst_35 {dimension_numbers = #tpu.dot_dimension_numbers<[1], [0], [0], [1], [0, 0, 1, 1], [], []>} : vector<8x32xbf16>, vector<32x128xbf16>, vector<8x128xf32> -> vector<8x128xf32>
    %c0_36 = arith.constant 0 : index
    %c0_37 = arith.constant 0 : index
    %48 = vector.load %arg9[%c0_36, %c0_37] : memref<1x128xf32, #tpu.memory_space<vmem>>, vector<1x128xf32>
    %49 = vector.broadcast %48 : vector<1x128xf32> to vector<8x128xf32>
    %50 = arith.addf %47, %49 : vector<8x128xf32>
    %cst_38 = arith.constant dense<0xFF800000> : vector<8xf32>
    %51 = vector.multi_reduction <maximumf>, %50, %cst_38 [1] : vector<8x128xf32> to vector<8xf32>
    %52 = vector.shape_cast %51 : vector<8xf32> to vector<8x1xf32>
    %53 = vector.broadcast %52 : vector<8x1xf32> to vector<8x128xf32>
    %54 = arith.subf %50, %53 : vector<8x128xf32>
    %55 = math.exp %54 : vector<8x128xf32>
    %cst_39 = arith.constant dense<0.000000e+00> : vector<8xf32>
    %56 = vector.multi_reduction <add>, %55, %cst_39 [1] : vector<8x128xf32> to vector<8xf32>
    %57 = vector.shape_cast %56 : vector<8xf32> to vector<8x1xf32>
    %58 = math.log %57 : vector<8x1xf32>
    %59 = vector.broadcast %58 : vector<8x1xf32> to vector<8x128xf32>
    %60 = arith.subf %54, %59 : vector<8x128xf32>
    %c0_40 = arith.constant 0 : index
    %c0_41 = arith.constant 0 : index
    %61 = vector.load %arg10[%c0_40, %c0_41] : memref<8x128xf32, #tpu.memory_space<vmem>>, vector<8x128xf32>
    tpu.vector_store %arg10[%c0_40, %c0_41], %60 {strides = array<i32>} : memref<8x128xf32, #tpu.memory_space<vmem>>, vector<8x128xf32>,
    return
  }
  func.func @transform_0(%arg0: i32) -> (i32, i32, i32) {
    %c0_i32 = arith.constant 0 : i32
    %c0_i32_0 = arith.constant 0 : i32
    %c0_i32_1 = arith.constant 0 : i32
    return %arg0, %c0_i32, %c0_i32_0 : i32, i32, i32
  }
  func.func @transform_1(%arg0: i32) -> (i32, i32) {
    %c0_i32 = arith.constant 0 : i32
    %c0_i32_0 = arith.constant 0 : i32
    %c0_i32_1 = arith.constant 0 : i32
    return %c0_i32, %c0_i32_0 : i32, i32
  }
  func.func @transform_2(%arg0: i32) -> (i32, i32) {
    %c0_i32 = arith.constant 0 : i32
    %c0_i32_0 = arith.constant 0 : i32
    %c0_i32_1 = arith.constant 0 : i32
    return %c0_i32, %c0_i32_0 : i32, i32
  }
  func.func @transform_3(%arg0: i32) -> (i32, i32) {
    %c0_i32 = arith.constant 0 : i32
    %c0_i32_0 = arith.constant 0 : i32
    %c0_i32_1 = arith.constant 0 : i32
    return %c0_i32, %c0_i32_0 : i32, i32
  }
  func.func @transform_4(%arg0: i32) -> (i32, i32) {
    %c0_i32 = arith.constant 0 : i32
    %c0_i32_0 = arith.constant 0 : i32
    %c0_i32_1 = arith.constant 0 : i32
    return %c0_i32, %c0_i32_0 : i32, i32
  }
  func.func @transform_5(%arg0: i32) -> (i32, i32) {
    %c0_i32 = arith.constant 0 : i32
    %c0_i32_0 = arith.constant 0 : i32
    %c0_i32_1 = arith.constant 0 : i32
    return %c0_i32, %c0_i32_0 : i32, i32
  }
  func.func @transform_6(%arg0: i32) -> (i32, i32) {
    %c0_i32 = arith.constant 0 : i32
    %c0_i32_0 = arith.constant 0 : i32
    %c0_i32_1 = arith.constant 0 : i32
    return %c0_i32, %c0_i32_0 : i32, i32
  }
  func.func @transform_7(%arg0: i32) -> (i32, i32) {
    %c0_i32 = arith.constant 0 : i32
    %c0_i32_0 = arith.constant 0 : i32
    %c0_i32_1 = arith.constant 0 : i32
    return %c0_i32, %c0_i32_0 : i32, i32
  }
  func.func @transform_8(%arg0: i32) -> (i32, i32) {
    %c0_i32 = arith.constant 0 : i32
    %c0_i32_0 = arith.constant 0 : i32
    %c0_i32_1 = arith.constant 0 : i32
    return %c0_i32, %c0_i32_0 : i32, i32
  }
  func.func @transform_9(%arg0: i32) -> (i32, i32) {
    %c0_i32 = arith.constant 0 : i32
    %c0_i32_0 = arith.constant 0 : i32
    return %arg0, %c0_i32 : i32, i32
  }
}

</mosaic_0001>

<llo_original>
// kernel: convnet_forward.1
$region0: #{convnet_forward.1}
  #allocation0 [shape = 'u32[]', space=smem, size = 0x4, offset = 0x4, fixed_abs, tag = 'smem constant byte address 0x4 - core index']
  #allocation1 [shape = 'u32[144,128]{1,0:T(1,128)}', space=vmem, size = 0x12000, scoped, tag = 'internal scratch']
  #allocation2 [shape = 'f32[8,128]{1,0:T(8,128)}', space=vmem, size = 0x1000, scoped, tag = 'scratch operand']
  %s0 = inlined_call_operand.vmem [shape: bf16[8,24,128], index: 0, kind: input, shape index: {}]
  %s1 = inlined_call_operand.vmem [shape: bf16[640,128], index: 1, kind: input, shape index: {}]
  %s2 = inlined_call_operand.hbm [shape: f32[1,128], index: 2, kind: input, shape index: {}]
  %s3 = inlined_call_operand.hbm [shape: bf16[128,256], index: 3, kind: input, shape index: {}]
  %s4 = inlined_call_operand.hbm [shape: f32[1,256], index: 4, kind: input, shape index: {}]
  %s5 = inlined_call_operand.vmem [shape: bf16[256,32], index: 5, kind: input, shape index: {}]
  %s6 = inlined_call_operand.vmem [shape: f32[1,32], index: 6, kind: input, shape index: {}]
  %s7 = inlined_call_operand.vmem [shape: bf16[32,128], index: 7, kind: input, shape index: {}]
  %s8 = inlined_call_operand.vmem [shape: f32[1,128], index: 8, kind: input, shape index: {}]
  %s9 = inlined_call_operand.vmem [shape: f32[8,128], index: 9, kind: output, shape index: {}]
  %s10 = sld [smem:[#allocation0]]
  $region58: #{convnet_forward.1} parent=0
    _
  %s12 = ssub.s32 1, %s10
  %s13 = scalar_select 0, %s12, %s10
  $region1: #{convnet_forward.1} parent=0
    #allocation3 [shape = 'u8[512]{0}', space=vmem, size = 0x400, scoped, tag = 'input window, operand 2, single buffered']
    #allocation4 [shape = 's32[1]{0}', space=sflag, size = 0x4, scoped, tag = 'scoped memory for convnet_forward.1']
    #allocation5 [shape = 'u8[65536]{0}', space=vmem, size = 0x10000, scoped, tag = 'input window, operand 3, single buffered']
    #allocation6 [shape = 's32[1]{0}', space=sflag, size = 0x4, scoped, tag = 'scoped memory for convnet_forward.1']
    #allocation7 [shape = 'u8[1024]{0}', space=vmem, size = 0x400, scoped, tag = 'input window, operand 4, single buffered']
    %14 = vsyncpa [#allocation4], 0
    %15 = vsyncpa [#allocation6], 0
    // Predicated region
    $region2: #{convnet_forward.1} parent=1 // pred_check
      _
    $region3: #{convnet_forward.1} parent=1 // pred_check_branch
      %17 = sbr.rel (0) target = $region5
    $region4: #{convnet_forward.1} parent=1 // pred_region
      _
    $region5: #{convnet_forward.1} parent=1 // pred_fallthru
      _
    // Predicated region
    $region6: #{convnet_forward.1} parent=1 // pred_check
      _
    $region7: #{convnet_forward.1} parent=1 // pred_check_branch
      %19 = sbr.rel (0) target = $region9
    $region8: #{convnet_forward.1} parent=1 // pred_region
      _
    $region9: #{convnet_forward.1} parent=1 // pred_fallthru
      _
    // Predicated region
    $region10: #{convnet_forward.1} parent=1 // pred_check
      _
    $region11: #{convnet_forward.1} parent=1 // pred_check_branch
      %21 = sbr.rel (0) target = $region13
    $region12: #{convnet_forward.1} parent=1 // pred_region
      %s23 = ssub.s32 16, 16
      %24 = vsyncadd [#allocation4], %s23
      %s26 = sshll.u32 [#allocation3], 4
      %s27 = int_to_ptr.vmem [resolvable:$true] %s26
      %29 = dma.hbm_to_vmem [thread:$0]  %s2, 16, %s27, [#allocation4]
    $region13: #{convnet_forward.1} parent=1 // pred_fallthru
      _
    // Predicated region
    $region14: #{convnet_forward.1} parent=1 // pred_check
      _
    $region15: #{convnet_forward.1} parent=1 // pred_check_branch
      %31 = sbr.rel (0) target = $region17
    $region16: #{convnet_forward.1} parent=1 // pred_region
      %s33 = ssub.s32 2048, 2048
      %34 = vsyncadd [#allocation6], %s33
      %s35 = sshll.u32 [#allocation5], 4
      %s36 = int_to_ptr.vmem [resolvable:$true] %s35
      %41 = dma.hbm_to_vmem [thread:$0]  %s3, 2048, %s36, [#allocation6], 128, 128, 8
    $region17: #{convnet_forward.1} parent=1 // pred_fallthru
      _
    // Predicated region
    $region18: #{convnet_forward.1} parent=1 // pred_check
      _
    $region19: #{convnet_forward.1} parent=1 // pred_check_branch
      %43 = sbr.rel (0) target = $region21
    $region20: #{convnet_forward.1} parent=1 // pred_region
      %s45 = ssub.s32 32, 32
      %46 = vsyncadd [#allocation6], %s45
      %s48 = sshll.u32 [#allocation7], 4
      %s49 = int_to_ptr.vmem [resolvable:$true] %s48
      %51 = dma.hbm_to_vmem [thread:$0]  %s4, 32, %s49, [#allocation6]
    $region21: #{convnet_forward.1} parent=1 // pred_fallthru
      _
    // Predicated region
    $region22: #{convnet_forward.1} parent=1 // pred_check
      _
    $region23: #{convnet_forward.1} parent=1 // pred_check_branch
      %53 = sbr.rel (0) target = $region25
    $region24: #{convnet_forward.1} parent=1 // pred_region
      _
    $region25: #{convnet_forward.1} parent=1 // pred_fallthru
      _
    // Predicated region
    $region26: #{convnet_forward.1} parent=1 // pred_check
      _
    $region27: #{convnet_forward.1} parent=1 // pred_check_branch
      %55 = sbr.rel (0) target = $region29
    $region28: #{convnet_forward.1} parent=1 // pred_region
      _
    $region29: #{convnet_forward.1} parent=1 // pred_fallthru
      _
    // Predicated region
    $region30: #{convnet_forward.1} parent=1 // pred_check
      _
    $region31: #{convnet_forward.1} parent=1 // pred_check_branch
      %57 = sbr.rel (0) target = $region33
    $region32: #{convnet_forward.1} parent=1 // pred_region
      _
    $region33: #{convnet_forward.1} parent=1 // pred_fallthru
      _
    // Predicated region
    $region34: #{convnet_forward.1} parent=1 // pred_check
      _
    $region35: #{convnet_forward.1} parent=1 // pred_check_branch
      %59 = sbr.rel (0) target = $region37
    $region36: #{convnet_forward.1} parent=1 // pred_region
      _
    $region37: #{convnet_forward.1} parent=1 // pred_fallthru
      _
    // Predicated region
    $region38: #{convnet_forward.1} parent=1 // pred_check
      _
    $region39: #{convnet_forward.1} parent=1 // pred_check_branch
      %61 = sbr.rel (0) target = $region41
    $region40: #{convnet_forward.1} parent=1 // pred_region
      %62 = dma.done [#allocation4], 16
    $region41: #{convnet_forward.1} parent=1 // pred_fallthru
      _
    // Predicated region
    $region42: #{convnet_forward.1} parent=1 // pred_check
      _
    $region43: #{convnet_forward.1} parent=1 // pred_check_branch
      %64 = sbr.rel (0) target = $region45
    $region44: #{convnet_forward.1} parent=1 // pred_region
      %65 = dma.done [#allocation6], 2048
    $region45: #{convnet_forward.1} parent=1 // pred_fallthru
      _
    // Predicated region
    $region46: #{convnet_forward.1} parent=1 // pred_check
      _
    $region47: #{convnet_forward.1} parent=1 // pred_check_branch
      %67 = sbr.rel (0) target = $region49
    $region48: #{convnet_forward.1} parent=1 // pred_region
      %68 = dma.done [#allocation6], 32
    $region49: #{convnet_forward.1} parent=1 // pred_fallthru
      _
    %v70 = vld [vmem:[%s0] sm:$0xf]
    %v71 = vld [vmem:[%s0 + $0x4] sm:$0xf]
    %v72 = vld [vmem:[%s0 + $0xc] sm:$0xf]
    %v73 = vld [vmem:[%s0 + $0x10] sm:$0xf]
    %v74 = vld [vmem:[%s0 + $0x18] sm:$0xf]
    %v75 = vld [vmem:[%s0 + $0x1c] sm:$0xf]
    %v76 = vld [vmem:[%s0 + $0x24] sm:$0xf]
    %v77 = vld [vmem:[%s0 + $0x28] sm:$0xf]
    %v78 = vld [vmem:[%s0 + $0x30] sm:$0xf]
    %v79 = vld [vmem:[%s0 + $0x34] sm:$0xf]
    %v80 = vld [vmem:[%s0 + $0x3c] sm:$0xf]
    %v81 = vld [vmem:[%s0 + $0x40] sm:$0xf]
    %v82 = vld [vmem:[%s0 + $0x48] sm:$0xf]
    %v83 = vld [vmem:[%s0 + $0x4c] sm:$0xf]
    %v84 = vld [vmem:[%s0 + $0x54] sm:$0xf]
    %v85 = vld [vmem:[%s0 + $0x58] sm:$0xf]
    %v86 = vld [vmem:[%s0] sm:$0xf]
    %v87 = vld [vmem:[%s0 + $0x4] sm:$0xf]
    %v88 = vld [vmem:[%s0 + $0x8] sm:$0x1]
    %v89 = vld [vmem:[%s0 + $0xc] sm:$0xf]
    %v90 = vld [vmem:[%s0 + $0x10] sm:$0xf]
    %v91 = vld [vmem:[%s0 + $0x14] sm:$0x1]
    %v92 = vld [vmem:[%s0 + $0x18] sm:$0xf]
    %v93 = vld [vmem:[%s0 + $0x1c] sm:$0xf]
    %v94 = vld [vmem:[%s0 + $0x20] sm:$0x1]
    %v95 = vld [vmem:[%s0 + $0x24] sm:$0xf]
    %v96 = vld [vmem:[%s0 + $0x28] sm:$0xf]
    %v97 = vld [vmem:[%s0 + $0x2c] sm:$0x1]
    %v98 = vld [vmem:[%s0 + $0x30] sm:$0xf]
    %v99 = vld [vmem:[%s0 + $0x34] sm:$0xf]
    %v100 = vld [vmem:[%s0 + $0x38] sm:$0x1]
    %v101 = vld [vmem:[%s0 + $0x3c] sm:$0xf]
    %v102 = vld [vmem:[%s0 + $0x40] sm:$0xf]
    %v103 = vld [vmem:[%s0 + $0x44] sm:$0x1]
    %v104 = vld [vmem:[%s0 + $0x48] sm:$0xf]
    %v105 = vld [vmem:[%s0 + $0x4c] sm:$0xf]
    %v106 = vld [vmem:[%s0 + $0x50] sm:$0x1]
    %v107 = vld [vmem:[%s0 + $0x54] sm:$0xf]
    %v108 = vld [vmem:[%s0 + $0x58] sm:$0xf]
    %v109 = vld [vmem:[%s0 + $0x5c] sm:$0x1]
    %vm110 = vsmask.f32 3328
    %vm111 = vsmask.f32 7440
    %vm112 = vmor %vm110, %vm111
    %v114 = vshrl.u32 %v86, 16
    %v116 = vrot.slane %v114, 4
    %v117 = vshll.u32 %v86, 16
    %v119 = vrot.slane %v117, 5
    %v120 = vor.u32 %v116, %v119
    %v121 = vrot.slane %v120, 4
    %v123 = vshll.u32 %v87, 16
    %v125 = vrot.slane %v123, 5
    %v126 = vsel %vm112, %v121, %v125
    %v127 = vshrl.u32 %v87, 16
    %v129 = vrot.slane %v127, 4
    %v130 = vor.u32 %v129, %v125
    %v131 = vrot.slane %v130, 4
    %v133 = vshll.u32 %v88, 16
    %v135 = vrot.slane %v133, 5
    %v136 = vsel %vm112, %v131, %v135
    %v138 = vshrl.u32 %v89, 16
    %v140 = vrot.slane %v138, 4
    %v141 = vshll.u32 %v89, 16
    %v143 = vrot.slane %v141, 5
    %v144 = vor.u32 %v140, %v143
    %v145 = vrot.slane %v144, 4
    %v147 = vshll.u32 %v90, 16
    %v149 = vrot.slane %v147, 5
    %v150 = vsel %vm112, %v145, %v149
    %v151 = vshrl.u32 %v90, 16
    %v153 = vrot.slane %v151, 4
    %v154 = vor.u32 %v153, %v149
    %v155 = vrot.slane %v154, 4
    %v157 = vshll.u32 %v91, 16
    %v159 = vrot.slane %v157, 5
    %v160 = vsel %vm112, %v155, %v159
    %v162 = vshrl.u32 %v92, 16
    %v164 = vrot.slane %v162, 4
    %v165 = vshll.u32 %v92, 16
    %v167 = vrot.slane %v165, 5
    %v168 = vor.u32 %v164, %v167
    %v169 = vrot.slane %v168, 4
    %v171 = vshll.u32 %v93, 16
    %v173 = vrot.slane %v171, 5
    %v174 = vsel %vm112, %v169, %v173
    %v175 = vshrl.u32 %v93, 16
    %v177 = vrot.slane %v175, 4
    %v178 = vor.u32 %v177, %v173
    %v179 = vrot.slane %v178, 4
    %v181 = vshll.u32 %v94, 16
    %v183 = vrot.slane %v181, 5
    %v184 = vsel %vm112, %v179, %v183
    %v186 = vshrl.u32 %v95, 16
    %v188 = vrot.slane %v186, 4
    %v189 = vshll.u32 %v95, 16
    %v191 = vrot.slane %v189, 5
    %v192 = vor.u32 %v188, %v191
    %v193 = vrot.slane %v192, 4
    %v195 = vshll.u32 %v96, 16
    %v197 = vrot.slane %v195, 5
    %v198 = vsel %vm112, %v193, %v197
    %v199 = vshrl.u32 %v96, 16
    %v201 = vrot.slane %v199, 4
    %v202 = vor.u32 %v201, %v197
    %v203 = vrot.slane %v202, 4
    %v205 = vshll.u32 %v97, 16
    %v207 = vrot.slane %v205, 5
    %v208 = vsel %vm112, %v203, %v207
    %v210 = vshrl.u32 %v98, 16
    %v212 = vrot.slane %v210, 4
    %v213 = vshll.u32 %v98, 16
    %v215 = vrot.slane %v213, 5
    %v216 = vor.u32 %v212, %v215
    %v217 = vrot.slane %v216, 4
    %v219 = vshll.u32 %v99, 16
    %v221 = vrot.slane %v219, 5
    %v222 = vsel %vm112, %v217, %v221
    %v223 = vshrl.u32 %v99, 16
    %v225 = vrot.slane %v223, 4
    %v226 = vor.u32 %v225, %v221
    %v227 = vrot.slane %v226, 4
    %v229 = vshll.u32 %v100, 16
    %v231 = vrot.slane %v229, 5
    %v232 = vsel %vm112, %v227, %v231
    %v234 = vshrl.u32 %v101, 16
    %v236 = vrot.slane %v234, 4
    %v237 = vshll.u32 %v101, 16
    %v239 = vrot.slane %v237, 5
    %v240 = vor.u32 %v236, %v239
    %v241 = vrot.slane %v240, 4
    %v243 = vshll.u32 %v102, 16
    %v245 = vrot.slane %v243, 5
    %v246 = vsel %vm112, %v241, %v245
    %v247 = vshrl.u32 %v102, 16
    %v249 = vrot.slane %v247, 4
    %v250 = vor.u32 %v249, %v245
    %v251 = vrot.slane %v250, 4
    %v253 = vshll.u32 %v103, 16
    %v255 = vrot.slane %v253, 5
    %v256 = vsel %vm112, %v251, %v255
    %v258 = vshrl.u32 %v104, 16
    %v260 = vrot.slane %v258, 4
    %v261 = vshll.u32 %v104, 16
    %v263 = vrot.slane %v261, 5
    %v264 = vor.u32 %v260, %v263
    %v265 = vrot.slane %v264, 4
    %v267 = vshll.u32 %v105, 16
    %v269 = vrot.slane %v267, 5
    %v270 = vsel %vm112, %v265, %v269
    %v271 = vshrl.u32 %v105, 16
    %v273 = vrot.slane %v271, 4
    %v274 = vor.u32 %v273, %v269
    %v275 = vrot.slane %v274, 4
    %v277 = vshll.u32 %v106, 16
    %v279 = vrot.slane %v277, 5
    %v280 = vsel %vm112, %v275, %v279
    %v282 = vshrl.u32 %v107, 16
    %v284 = vrot.slane %v282, 4
    %v285 = vshll.u32 %v107, 16
    %v287 = vrot.slane %v285, 5
    %v288 = vor.u32 %v284, %v287
    %v289 = vrot.slane %v288, 4
    %v291 = vshll.u32 %v108, 16
    %v293 = vrot.slane %v291, 5
    %v294 = vsel %vm112, %v289, %v293
    %v295 = vshrl.u32 %v108, 16
    %v297 = vrot.slane %v295, 4
    %v298 = vor.u32 %v297, %v293
    %v299 = vrot.slane %v298, 4
    %v301 = vshll.u32 %v109, 16
    %v303 = vrot.slane %v301, 5
    %v304 = vsel %vm112, %v299, %v303
    %v305 = vld [vmem:[%s0] sm:$0xe]
    %v306 = vld [vmem:[%s0 + $0xc] sm:$0xe]
    %v307 = vld [vmem:[%s0 + $0x18] sm:$0xe]
    %v308 = vld [vmem:[%s0 + $0x24] sm:$0xe]
    %v309 = vld [vmem:[%s0 + $0x30] sm:$0xe]
    %v310 = vld [vmem:[%s0 + $0x3c] sm:$0xe]
    %v311 = vld [vmem:[%s0 + $0x48] sm:$0xe]
    %v312 = vld [vmem:[%s0 + $0x54] sm:$0xe]
    %vm337 = vcmask 1042432
    %vm338 = vcmask 1046532
    %vm339 = vmor %vm337, %vm338
    %v340 = vrot.slane %v305, 5
    %v341 = vrot.slane %v340, 4
    %v342 = vrot.slane %v87, 5
    %v343 = vsel %vm339, %v341, %v342
    %v344 = vrot.slane %v342, 4
    %v345 = vrot.slane %v88, 5
    %v346 = vsel %vm339, %v344, %v345
    %v347 = vrot.slane %v306, 5
    %v348 = vrot.slane %v347, 4
    %v349 = vrot.slane %v90, 5
    %v350 = vsel %vm339, %v348, %v349
    %v351 = vrot.slane %v349, 4
    %v352 = vrot.slane %v91, 5
    %v353 = vsel %vm339, %v351, %v352
    %v354 = vrot.slane %v307, 5
    %v355 = vrot.slane %v354, 4
    %v356 = vrot.slane %v93, 5
    %v357 = vsel %vm339, %v355, %v356
    %v358 = vrot.slane %v356, 4
    %v359 = vrot.slane %v94, 5
    %v360 = vsel %vm339, %v358, %v359
    %v361 = vrot.slane %v308, 5
    %v362 = vrot.slane %v361, 4
    %v363 = vrot.slane %v96, 5
    %v364 = vsel %vm339, %v362, %v363
    %v365 = vrot.slane %v363, 4
    %v366 = vrot.slane %v97, 5
    %v367 = vsel %vm339, %v365, %v366
    %v368 = vrot.slane %v309, 5
    %v369 = vrot.slane %v368, 4
    %v370 = vrot.slane %v99, 5
    %v371 = vsel %vm339, %v369, %v370
    %v372 = vrot.slane %v370, 4
    %v373 = vrot.slane %v100, 5
    %v374 = vsel %vm339, %v372, %v373
    %v375 = vrot.slane %v310, 5
    %v376 = vrot.slane %v375, 4
    %v377 = vrot.slane %v102, 5
    %v378 = vsel %vm339, %v376, %v377
    %v379 = vrot.slane %v377, 4
    %v380 = vrot.slane %v103, 5
    %v381 = vsel %vm339, %v379, %v380
    %v382 = vrot.slane %v311, 5
    %v383 = vrot.slane %v382, 4
    %v384 = vrot.slane %v105, 5
    %v385 = vsel %vm339, %v383, %v384
    %v386 = vrot.slane %v384, 4
    %v387 = vrot.slane %v106, 5
    %v388 = vsel %vm339, %v386, %v387
    %v389 = vrot.slane %v312, 5
    %v390 = vrot.slane %v389, 4
    %v391 = vrot.slane %v108, 5
    %v392 = vsel %vm339, %v390, %v391
    %v393 = vrot.slane %v391, 4
    %v394 = vrot.slane %v109, 5
    %v395 = vsel %vm339, %v393, %v394
    %v396 = vld [vmem:[%s0 + $0x8] sm:$0x3]
    %v397 = vld [vmem:[%s0 + $0x14] sm:$0x3]
    %v398 = vld [vmem:[%s0 + $0x20] sm:$0x3]
    %v399 = vld [vmem:[%s0 + $0x2c] sm:$0x3]
    %v400 = vld [vmem:[%s0 + $0x38] sm:$0x3]
    %v401 = vld [vmem:[%s0 + $0x44] sm:$0x3]
    %v402 = vld [vmem:[%s0 + $0x50] sm:$0x3]
    %v403 = vld [vmem:[%s0 + $0x5c] sm:$0x3]
    %vm404 = vsmask.f32 2304
    %vm405 = vsmask.f32 6416
    %vm406 = vmor %vm404, %vm405
    %v408 = vshrl.u32 %v305, 16
    %v410 = vrot.slane %v408, 5
    %v411 = vshll.u32 %v305, 16
    %v413 = vrot.slane %v411, 6
    %v414 = vor.u32 %v410, %v413
    %v415 = vrot.slane %v414, 4
    %v416 = vrot.slane %v127, 5
    %v417 = vrot.slane %v123, 6
    %v418 = vor.u32 %v416, %v417
    %v419 = vsel %vm406, %v415, %v418
    %v420 = vrot.slane %v418, 4
    %v422 = vshrl.u32 %v396, 16
    %v424 = vrot.slane %v422, 5
    %v425 = vshll.u32 %v396, 16
    %v427 = vrot.slane %v425, 6
    %v428 = vor.u32 %v424, %v427
    %v429 = vsel %vm406, %v420, %v428
    %v431 = vshrl.u32 %v306, 16
    %v433 = vrot.slane %v431, 5
    %v434 = vshll.u32 %v306, 16
    %v436 = vrot.slane %v434, 6
    %v437 = vor.u32 %v433, %v436
    %v438 = vrot.slane %v437, 4
    %v439 = vrot.slane %v151, 5
    %v440 = vrot.slane %v147, 6
    %v441 = vor.u32 %v439, %v440
    %v442 = vsel %vm406, %v438, %v441
    %v443 = vrot.slane %v441, 4
    %v445 = vshrl.u32 %v397, 16
    %v447 = vrot.slane %v445, 5
    %v448 = vshll.u32 %v397, 16
    %v450 = vrot.slane %v448, 6
    %v451 = vor.u32 %v447, %v450
    %v452 = vsel %vm406, %v443, %v451
    %v454 = vshrl.u32 %v307, 16
    %v456 = vrot.slane %v454, 5
    %v457 = vshll.u32 %v307, 16
    %v459 = vrot.slane %v457, 6
    %v460 = vor.u32 %v456, %v459
    %v461 = vrot.slane %v460, 4
    %v462 = vrot.slane %v175, 5
    %v463 = vrot.slane %v171, 6
    %v464 = vor.u32 %v462, %v463
    %v465 = vsel %vm406, %v461, %v464
    %v466 = vrot.slane %v464, 4
    %v468 = vshrl.u32 %v398, 16
    %v470 = vrot.slane %v468, 5
    %v471 = vshll.u32 %v398, 16
    %v473 = vrot.slane %v471, 6
    %v474 = vor.u32 %v470, %v473
    %v475 = vsel %vm406, %v466, %v474
    %v477 = vshrl.u32 %v308, 16
    %v479 = vrot.slane %v477, 5
    %v480 = vshll.u32 %v308, 16
    %v482 = vrot.slane %v480, 6
    %v483 = vor.u32 %v479, %v482
    %v484 = vrot.slane %v483, 4
    %v485 = vrot.slane %v199, 5
    %v486 = vrot.slane %v195, 6
    %v487 = vor.u32 %v485, %v486
    %v488 = vsel %vm406, %v484, %v487
    %v489 = vrot.slane %v487, 4
    %v491 = vshrl.u32 %v399, 16
    %v493 = vrot.slane %v491, 5
    %v494 = vshll.u32 %v399, 16
    %v496 = vrot.slane %v494, 6
    %v497 = vor.u32 %v493, %v496
    %v498 = vsel %vm406, %v489, %v497
    %v500 = vshrl.u32 %v309, 16
    %v502 = vrot.slane %v500, 5
    %v503 = vshll.u32 %v309, 16
    %v505 = vrot.slane %v503, 6
    %v506 = vor.u32 %v502, %v505
    %v507 = vrot.slane %v506, 4
    %v508 = vrot.slane %v223, 5
    %v509 = vrot.slane %v219, 6
    %v510 = vor.u32 %v508, %v509
    %v511 = vsel %vm406, %v507, %v510
    %v512 = vrot.slane %v510, 4
    %v514 = vshrl.u32 %v400, 16
    %v516 = vrot.slane %v514, 5
    %v517 = vshll.u32 %v400, 16
    %v519 = vrot.slane %v517, 6
    %v520 = vor.u32 %v516, %v519
    %v521 = vsel %vm406, %v512, %v520
    %v523 = vshrl.u32 %v310, 16
    %v525 = vrot.slane %v523, 5
    %v526 = vshll.u32 %v310, 16
    %v528 = vrot.slane %v526, 6
    %v529 = vor.u32 %v525, %v528
    %v530 = vrot.slane %v529, 4
    %v531 = vrot.slane %v247, 5
    %v532 = vrot.slane %v243, 6
    %v533 = vor.u32 %v531, %v532
    %v534 = vsel %vm406, %v530, %v533
    %v535 = vrot.slane %v533, 4
    %v537 = vshrl.u32 %v401, 16
    %v539 = vrot.slane %v537, 5
    %v540 = vshll.u32 %v401, 16
    %v542 = vrot.slane %v540, 6
    %v543 = vor.u32 %v539, %v542
    %v544 = vsel %vm406, %v535, %v543
    %v546 = vshrl.u32 %v311, 16
    %v548 = vrot.slane %v546, 5
    %v549 = vshll.u32 %v311, 16
    %v551 = vrot.slane %v549, 6
    %v552 = vor.u32 %v548, %v551
    %v553 = vrot.slane %v552, 4
    %v554 = vrot.slane %v271, 5
    %v555 = vrot.slane %v267, 6
    %v556 = vor.u32 %v554, %v555
    %v557 = vsel %vm406, %v553, %v556
    %v558 = vrot.slane %v556, 4
    %v560 = vshrl.u32 %v402, 16
    %v562 = vrot.slane %v560, 5
    %v563 = vshll.u32 %v402, 16
    %v565 = vrot.slane %v563, 6
    %v566 = vor.u32 %v562, %v565
    %v567 = vsel %vm406, %v558, %v566
    %v569 = vshrl.u32 %v312, 16
    %v571 = vrot.slane %v569, 5
    %v572 = vshll.u32 %v312, 16
    %v574 = vrot.slane %v572, 6
    %v575 = vor.u32 %v571, %v574
    %v576 = vrot.slane %v575, 4
    %v577 = vrot.slane %v295, 5
    %v578 = vrot.slane %v291, 6
    %v579 = vor.u32 %v577, %v578
    %v580 = vsel %vm406, %v576, %v579
    %v581 = vrot.slane %v579, 4
    %v583 = vshrl.u32 %v403, 16
    %v585 = vrot.slane %v583, 5
    %v586 = vshll.u32 %v403, 16
    %v588 = vrot.slane %v586, 6
    %v589 = vor.u32 %v585, %v588
    %v590 = vsel %vm406, %v581, %v589
    %v591 = vld [vmem:[%s0] sm:$0xc]
    %v592 = vld [vmem:[%s0 + $0xc] sm:$0xc]
    %v593 = vld [vmem:[%s0 + $0x18] sm:$0xc]
    %v594 = vld [vmem:[%s0 + $0x24] sm:$0xc]
    %v595 = vld [vmem:[%s0 + $0x30] sm:$0xc]
    %v596 = vld [vmem:[%s0 + $0x3c] sm:$0xc]
    %v597 = vld [vmem:[%s0 + $0x48] sm:$0xc]
    %v598 = vld [vmem:[%s0 + $0x54] sm:$0xc]
    %vm615 = vcmask 1041408
    %vm616 = vcmask 1045508
    %vm617 = vmor %vm615, %vm616
    %v618 = vrot.slane %v591, 6
    %v619 = vrot.slane %v618, 4
    %v620 = vrot.slane %v87, 6
    %v621 = vsel %vm617, %v619, %v620
    %v622 = vrot.slane %v620, 4
    %v623 = vrot.slane %v396, 6
    %v624 = vsel %vm617, %v622, %v623
    %v625 = vrot.slane %v592, 6
    %v626 = vrot.slane %v625, 4
    %v627 = vrot.slane %v90, 6
    %v628 = vsel %vm617, %v626, %v627
    %v629 = vrot.slane %v627, 4
    %v630 = vrot.slane %v397, 6
    %v631 = vsel %vm617, %v629, %v630
    %v632 = vrot.slane %v593, 6
    %v633 = vrot.slane %v632, 4
    %v634 = vrot.slane %v93, 6
    %v635 = vsel %vm617, %v633, %v634
    %v636 = vrot.slane %v634, 4
    %v637 = vrot.slane %v398, 6
    %v638 = vsel %vm617, %v636, %v637
    %v639 = vrot.slane %v594, 6
    %v640 = vrot.slane %v639, 4
    %v641 = vrot.slane %v96, 6
    %v642 = vsel %vm617, %v640, %v641
    %v643 = vrot.slane %v641, 4
    %v644 = vrot.slane %v399, 6
    %v645 = vsel %vm617, %v643, %v644
    %v646 = vrot.slane %v595, 6
    %v647 = vrot.slane %v646, 4
    %v648 = vrot.slane %v99, 6
    %v649 = vsel %vm617, %v647, %v648
    %v650 = vrot.slane %v648, 4
    %v651 = vrot.slane %v400, 6
    %v652 = vsel %vm617, %v650, %v651
    %v653 = vrot.slane %v596, 6
    %v654 = vrot.slane %v653, 4
    %v655 = vrot.slane %v102, 6
    %v656 = vsel %vm617, %v654, %v655
    %v657 = vrot.slane %v655, 4
    %v658 = vrot.slane %v401, 6
    %v659 = vsel %vm617, %v657, %v658
    %v660 = vrot.slane %v597, 6
    %v661 = vrot.slane %v660, 4
    %v662 = vrot.slane %v105, 6
    %v663 = vsel %vm617, %v661, %v662
    %v664 = vrot.slane %v662, 4
    %v665 = vrot.slane %v402, 6
    %v666 = vsel %vm617, %v664, %v665
    %v667 = vrot.slane %v598, 6
    %v668 = vrot.slane %v667, 4
    %v669 = vrot.slane %v108, 6
    %v670 = vsel %vm617, %v668, %v669
    %v671 = vrot.slane %v669, 4
    %v672 = vrot.slane %v403, 6
    %v673 = vsel %vm617, %v671, %v672
    %v690 = vunpack.c.l.b16 %v70
    %v691 = vunpack.c.l.b16 %v71
    %v692 = vunpack.c.l.b16 %v72
    %v693 = vunpack.c.l.b16 %v73
    %v694 = vunpack.c.l.b16 %v74
    %v695 = vunpack.c.l.b16 %v75
    %v696 = vunpack.c.l.b16 %v76
    %v697 = vunpack.c.l.b16 %v77
    %v698 = vunpack.c.l.b16 %v78
    %v699 = vunpack.c.l.b16 %v79
    %v700 = vunpack.c.l.b16 %v80
    %v701 = vunpack.c.l.b16 %v81
    %v702 = vunpack.c.l.b16 %v82
    %v703 = vunpack.c.l.b16 %v83
    %v704 = vunpack.c.l.b16 %v84
    %v705 = vunpack.c.l.b16 %v85
    %v706 = vpack.c.b16 %v691, %v690
    %v707 = vpack.c.b16 %v693, %v692
    %v708 = vpack.c.b16 %v695, %v694
    %v709 = vpack.c.b16 %v697, %v696
    %v710 = vpack.c.b16 %v699, %v698
    %v711 = vpack.c.b16 %v701, %v700
    %v712 = vpack.c.b16 %v703, %v702
    %v713 = vpack.c.b16 %v705, %v704
    %v722 = vunpack.c.l.b16 %v126
    %v723 = vunpack.c.l.b16 %v136
    %v724 = vunpack.c.l.b16 %v150
    %v725 = vunpack.c.l.b16 %v160
    %v726 = vunpack.c.l.b16 %v174
    %v727 = vunpack.c.l.b16 %v184
    %v728 = vunpack.c.l.b16 %v198
    %v729 = vunpack.c.l.b16 %v208
    %v730 = vunpack.c.l.b16 %v222
    %v731 = vunpack.c.l.b16 %v232
    %v732 = vunpack.c.l.b16 %v246
    %v733 = vunpack.c.l.b16 %v256
    %v734 = vunpack.c.l.b16 %v270
    %v735 = vunpack.c.l.b16 %v280
    %v736 = vunpack.c.l.b16 %v294
    %v737 = vunpack.c.l.b16 %v304
    %v738 = vpack.c.b16 %v723, %v722
    %v739 = vpack.c.b16 %v725, %v724
    %v740 = vpack.c.b16 %v727, %v726
    %v741 = vpack.c.b16 %v729, %v728
    %v742 = vpack.c.b16 %v731, %v730
    %v743 = vpack.c.b16 %v733, %v732
    %v744 = vpack.c.b16 %v735, %v734
    %v745 = vpack.c.b16 %v737, %v736
    %v754 = vunpack.c.l.b16 %v343
    %v755 = vunpack.c.l.b16 %v346
    %v756 = vunpack.c.l.b16 %v350
    %v757 = vunpack.c.l.b16 %v353
    %v758 = vunpack.c.l.b16 %v357
    %v759 = vunpack.c.l.b16 %v360
    %v760 = vunpack.c.l.b16 %v364
    %v761 = vunpack.c.l.b16 %v367
    %v762 = vunpack.c.l.b16 %v371
    %v763 = vunpack.c.l.b16 %v374
    %v764 = vunpack.c.l.b16 %v378
    %v765 = vunpack.c.l.b16 %v381
    %v766 = vunpack.c.l.b16 %v385
    %v767 = vunpack.c.l.b16 %v388
    %v768 = vunpack.c.l.b16 %v392
    %v769 = vunpack.c.l.b16 %v395
    %v770 = vpack.c.b16 %v755, %v754
    %v771 = vpack.c.b16 %v757, %v756
    %v772 = vpack.c.b16 %v759, %v758
    %v773 = vpack.c.b16 %v761, %v760
    %v774 = vpack.c.b16 %v763, %v762
    %v775 = vpack.c.b16 %v765, %v764
    %v776 = vpack.c.b16 %v767, %v766
    %v777 = vpack.c.b16 %v769, %v768
    %v786 = vunpack.c.l.b16 %v419
    %v787 = vunpack.c.l.b16 %v429
    %v788 = vunpack.c.l.b16 %v442
    %v789 = vunpack.c.l.b16 %v452
    %v790 = vunpack.c.l.b16 %v465
    %v791 = vunpack.c.l.b16 %v475
    %v792 = vunpack.c.l.b16 %v488
    %v793 = vunpack.c.l.b16 %v498
    %v794 = vunpack.c.l.b16 %v511
    %v795 = vunpack.c.l.b16 %v521
    %v796 = vunpack.c.l.b16 %v534
    %v797 = vunpack.c.l.b16 %v544
    %v798 = vunpack.c.l.b16 %v557
    %v799 = vunpack.c.l.b16 %v567
    %v800 = vunpack.c.l.b16 %v580
    %v801 = vunpack.c.l.b16 %v590
    %v802 = vpack.c.b16 %v787, %v786
    %v803 = vpack.c.b16 %v789, %v788
    %v804 = vpack.c.b16 %v791, %v790
    %v805 = vpack.c.b16 %v793, %v792
    %v806 = vpack.c.b16 %v795, %v794
    %v807 = vpack.c.b16 %v797, %v796
    %v808 = vpack.c.b16 %v799, %v798
    %v809 = vpack.c.b16 %v801, %v800
    %v818 = vunpack.c.l.b16 %v621
    %v819 = vunpack.c.l.b16 %v624
    %v820 = vunpack.c.l.b16 %v628
    %v821 = vunpack.c.l.b16 %v631
    %v822 = vunpack.c.l.b16 %v635
    %v823 = vunpack.c.l.b16 %v638
    %v824 = vunpack.c.l.b16 %v642
    %v825 = vunpack.c.l.b16 %v645
    %v826 = vunpack.c.l.b16 %v649
    %v827 = vunpack.c.l.b16 %v652
    %v828 = vunpack.c.l.b16 %v656
    %v829 = vunpack.c.l.b16 %v659
    %v830 = vunpack.c.l.b16 %v663
    %v831 = vunpack.c.l.b16 %v666
    %v832 = vunpack.c.l.b16 %v670
    %v833 = vunpack.c.l.b16 %v673
    %v834 = vpack.c.b16 %v819, %v818
    %v835 = vpack.c.b16 %v821, %v820
    %v836 = vpack.c.b16 %v823, %v822
    %v837 = vpack.c.b16 %v825, %v824
    %v838 = vpack.c.b16 %v827, %v826
    %v839 = vpack.c.b16 %v829, %v828
    %v840 = vpack.c.b16 %v831, %v830
    %v841 = vpack.c.b16 %v833, %v832
    %v850 = vlaneseq
    %v851 = vshrl.u32 %v850, 7
    %v852 = vadd.s32 %v851, 8
    %vm853 = vcmp.lt.s32.totalorder %v851, 12
    %vm854 = vcmp.lt.s32.totalorder %v852, 12
    %v855 = vld [vmem:[%s1] sm:$0xf]
    %v856 = vld [vmem:[%s1 + $0x4] sm:$0xf]
    %v857 = vld [vmem:[%s1 + $0x8] sm:$0xf]
    %v858 = vld [vmem:[%s1 + $0xc] sm:$0xf]
    %v859 = vld [vmem:[%s1 + $0x10] sm:$0xf]
    %v860 = vld [vmem:[%s1 + $0x14] sm:$0xf]
    %v861 = vld [vmem:[%s1 + $0x18] sm:$0xf]
    %v862 = vld [vmem:[%s1 + $0x1c] sm:$0xf]
    %v863 = vld [vmem:[%s1 + $0x20] sm:$0xf]
    %v864 = vld [vmem:[%s1 + $0x24] sm:$0xf]
    %v865 = vld [vmem:[%s1 + $0x28] sm:$0xf]
    %v866 = vld [vmem:[%s1 + $0x2c] sm:$0xf]
    %v867 = vld [vmem:[%s1 + $0x30] sm:$0xf]
    %v868 = vld [vmem:[%s1 + $0x34] sm:$0xf]
    %v869 = vld [vmem:[%s1 + $0x38] sm:$0xf]
    %v870 = vld [vmem:[%s1 + $0x3c] sm:$0xf]
    %v871 = vld [vmem:[%s1 + $0x40] sm:$0xf]
    %v872 = vld [vmem:[%s1 + $0x44] sm:$0xf]
    %v873 = vld [vmem:[%s1 + $0x48] sm:$0xf]
    %v874 = vld [vmem:[%s1 + $0x4c] sm:$0xf]
    %v875 = vld [vmem:[%s1 + $0x50] sm:$0xf]
    %v876 = vld [vmem:[%s1 + $0x54] sm:$0xf]
    %v877 = vld [vmem:[%s1 + $0x58] sm:$0xf]
    %v878 = vld [vmem:[%s1 + $0x5c] sm:$0xf]
    %v879 = vld [vmem:[%s1 + $0x60] sm:$0xf]
    %v880 = vld [vmem:[%s1 + $0x64] sm:$0xf]
    %v881 = vld [vmem:[%s1 + $0x68] sm:$0xf]
    %v882 = vld [vmem:[%s1 + $0x6c] sm:$0xf]
    %v883 = vld [vmem:[%s1 + $0x70] sm:$0xf]
    %v884 = vld [vmem:[%s1 + $0x74] sm:$0xf]
    %v885 = vld [vmem:[%s1 + $0x78] sm:$0xf]
    %v886 = vld [vmem:[%s1 + $0x7c] sm:$0xf]
    %v887 = vld [vmem:[%s1 + $0x80] sm:$0xf]
    %v888 = vld [vmem:[%s1 + $0x84] sm:$0xf]
    %v889 = vld [vmem:[%s1 + $0x88] sm:$0xf]
    %v890 = vld [vmem:[%s1 + $0x8c] sm:$0xf]
    %v891 = vld [vmem:[%s1 + $0x90] sm:$0xf]
    %v892 = vld [vmem:[%s1 + $0x94] sm:$0xf]
    %v893 = vld [vmem:[%s1 + $0x98] sm:$0xf]
    %v894 = vld [vmem:[%s1 + $0x9c] sm:$0xf]
    %v895 = vld [vmem:[%s1 + $0xa0] sm:$0xf]
    %v896 = vld [vmem:[%s1 + $0xa4] sm:$0xf]
    %v897 = vld [vmem:[%s1 + $0xa8] sm:$0xf]
    %v898 = vld [vmem:[%s1 + $0xac] sm:$0xf]
    %v899 = vld [vmem:[%s1 + $0xb0] sm:$0xf]
    %v900 = vld [vmem:[%s1 + $0xb4] sm:$0xf]
    %v901 = vld [vmem:[%s1 + $0xb8] sm:$0xf]
    %v902 = vld [vmem:[%s1 + $0xbc] sm:$0xf]
    %v903 = vld [vmem:[%s1 + $0xc0] sm:$0xf]
    %v904 = vld [vmem:[%s1 + $0xc4] sm:$0xf]
    %v905 = vld [vmem:[%s1 + $0xc8] sm:$0xf]
    %v906 = vld [vmem:[%s1 + $0xcc] sm:$0xf]
    %v907 = vld [vmem:[%s1 + $0xd0] sm:$0xf]
    %v908 = vld [vmem:[%s1 + $0xd4] sm:$0xf]
    %v909 = vld [vmem:[%s1 + $0xd8] sm:$0xf]
    %v910 = vld [vmem:[%s1 + $0xdc] sm:$0xf]
    %v911 = vld [vmem:[%s1 + $0xe0] sm:$0xf]
    %v912 = vld [vmem:[%s1 + $0xe4] sm:$0xf]
    %v913 = vld [vmem:[%s1 + $0xe8] sm:$0xf]
    %v914 = vld [vmem:[%s1 + $0xec] sm:$0xf]
    %v915 = vld [vmem:[%s1 + $0xf0] sm:$0xf]
    %v916 = vld [vmem:[%s1 + $0xf4] sm:$0xf]
    %v917 = vld [vmem:[%s1 + $0xf8] sm:$0xf]
    %v918 = vld [vmem:[%s1 + $0xfc] sm:$0xf]
    %v919 = vld [vmem:[%s1 + $0x100] sm:$0xf]
    %v920 = vld [vmem:[%s1 + $0x104] sm:$0xf]
    %v921 = vld [vmem:[%s1 + $0x108] sm:$0xf]
    %v922 = vld [vmem:[%s1 + $0x10c] sm:$0xf]
    %v923 = vld [vmem:[%s1 + $0x110] sm:$0xf]
    %v924 = vld [vmem:[%s1 + $0x114] sm:$0xf]
    %v925 = vld [vmem:[%s1 + $0x118] sm:$0xf]
    %v926 = vld [vmem:[%s1 + $0x11c] sm:$0xf]
    %v927 = vld [vmem:[%s1 + $0x120] sm:$0xf]
    %v928 = vld [vmem:[%s1 + $0x124] sm:$0xf]
    %v929 = vld [vmem:[%s1 + $0x128] sm:$0xf]
    %v930 = vld [vmem:[%s1 + $0x12c] sm:$0xf]
    %v931 = vld [vmem:[%s1 + $0x130] sm:$0xf]
    %v932 = vld [vmem:[%s1 + $0x134] sm:$0xf]
    %v933 = vld [vmem:[%s1 + $0x138] sm:$0xf]
    %v934 = vld [vmem:[%s1 + $0x13c] sm:$0xf]
    %v935 = vld [vmem:[#allocation3] sm:$0x1]
    %v937 = vlaneseq
    %v938 = vshrl.u32 %v937, 7
    %v939 = vsub.s32 0, %v938
    %v940 = vrot.slane %v935, %v939
    %v1022 = vunpack.c.l.b16 %v855
    %v1023 = vunpack.c.l.b16 %v856
    %v1024 = vunpack.c.l.b16 %v857
    %v1025 = vunpack.c.l.b16 %v858
    %v1026 = vunpack.c.l.b16 %v859
    %v1027 = vunpack.c.l.b16 %v860
    %v1028 = vunpack.c.l.b16 %v861
    %v1029 = vunpack.c.l.b16 %v862
    %v1030 = vunpack.c.l.b16 %v863
    %v1031 = vunpack.c.l.b16 %v864
    %v1032 = vunpack.c.l.b16 %v865
    %v1033 = vunpack.c.l.b16 %v866
    %v1034 = vunpack.c.l.b16 %v867
    %v1035 = vunpack.c.l.b16 %v868
    %v1036 = vunpack.c.l.b16 %v869
    %v1037 = vunpack.c.l.b16 %v870
    %v1038 = vunpack.c.l.b16 %v871
    %v1039 = vunpack.c.l.b16 %v872
    %v1040 = vunpack.c.l.b16 %v873
    %v1041 = vunpack.c.l.b16 %v874
    %v1042 = vunpack.c.l.b16 %v875
    %v1043 = vunpack.c.l.b16 %v876
    %v1044 = vunpack.c.l.b16 %v877
    %v1045 = vunpack.c.l.b16 %v878
    %v1046 = vunpack.c.l.b16 %v879
    %v1047 = vunpack.c.l.b16 %v880
    %v1048 = vunpack.c.l.b16 %v881
    %v1049 = vunpack.c.l.b16 %v882
    %v1050 = vunpack.c.l.b16 %v883
    %v1051 = vunpack.c.l.b16 %v884
    %v1052 = vunpack.c.l.b16 %v885
    %v1053 = vunpack.c.l.b16 %v886
    %v1054 = vunpack.c.l.b16 %v887
    %v1055 = vunpack.c.l.b16 %v888
    %v1056 = vunpack.c.l.b16 %v889
    %v1057 = vunpack.c.l.b16 %v890
    %v1058 = vunpack.c.l.b16 %v891
    %v1059 = vunpack.c.l.b16 %v892
    %v1060 = vunpack.c.l.b16 %v893
    %v1061 = vunpack.c.l.b16 %v894
    %v1062 = vunpack.c.l.b16 %v895
    %v1063 = vunpack.c.l.b16 %v896
    %v1064 = vunpack.c.l.b16 %v897
    %v1065 = vunpack.c.l.b16 %v898
    %v1066 = vunpack.c.l.b16 %v899
    %v1067 = vunpack.c.l.b16 %v900
    %v1068 = vunpack.c.l.b16 %v901
    %v1069 = vunpack.c.l.b16 %v902
    %v1070 = vunpack.c.l.b16 %v903
    %v1071 = vunpack.c.l.b16 %v904
    %v1072 = vunpack.c.l.b16 %v905
    %v1073 = vunpack.c.l.b16 %v906
    %v1074 = vunpack.c.l.b16 %v907
    %v1075 = vunpack.c.l.b16 %v908
    %v1076 = vunpack.c.l.b16 %v909
    %v1077 = vunpack.c.l.b16 %v910
    %v1078 = vunpack.c.l.b16 %v911
    %v1079 = vunpack.c.l.b16 %v912
    %v1080 = vunpack.c.l.b16 %v913
    %v1081 = vunpack.c.l.b16 %v914
    %v1082 = vunpack.c.l.b16 %v915
    %v1083 = vunpack.c.l.b16 %v916
    %v1084 = vunpack.c.l.b16 %v917
    %v1085 = vunpack.c.l.b16 %v918
    %v1086 = vunpack.c.l.b16 %v919
    %v1087 = vunpack.c.l.b16 %v920
    %v1088 = vunpack.c.l.b16 %v921
    %v1089 = vunpack.c.l.b16 %v922
    %v1090 = vunpack.c.l.b16 %v923
    %v1091 = vunpack.c.l.b16 %v924
    %v1092 = vunpack.c.l.b16 %v925
    %v1093 = vunpack.c.l.b16 %v926
    %v1094 = vunpack.c.l.b16 %v927
    %v1095 = vunpack.c.l.b16 %v928
    %v1096 = vunpack.c.l.b16 %v929
    %v1097 = vunpack.c.l.b16 %v930
    %v1098 = vunpack.c.l.b16 %v931
    %v1099 = vunpack.c.l.b16 %v932
    %v1100 = vunpack.c.l.b16 %v933
    %v1101 = vunpack.c.l.b16 %v934
    %v1102 = vpack.c.b16 %v1023, %v1022
    %v1103 = vpack.c.b16 %v1025, %v1024
    %v1104 = vpack.c.b16 %v1027, %v1026
    %v1105 = vpack.c.b16 %v1029, %v1028
    %v1106 = vpack.c.b16 %v1031, %v1030
    %v1107 = vpack.c.b16 %v1033, %v1032
    %v1108 = vpack.c.b16 %v1035, %v1034
    %v1109 = vpack.c.b16 %v1037, %v1036
    %v1110 = vpack.c.b16 %v1039, %v1038
    %v1111 = vpack.c.b16 %v1041, %v1040
    %v1112 = vpack.c.b16 %v1043, %v1042
    %v1113 = vpack.c.b16 %v1045, %v1044
    %v1114 = vpack.c.b16 %v1047, %v1046
    %v1115 = vpack.c.b16 %v1049, %v1048
    %v1116 = vpack.c.b16 %v1051, %v1050
    %v1117 = vpack.c.b16 %v1053, %v1052
    %v1118 = vpack.c.b16 %v1055, %v1054
    %v1119 = vpack.c.b16 %v1057, %v1056
    %v1120 = vpack.c.b16 %v1059, %v1058
    %v1121 = vpack.c.b16 %v1061, %v1060
    %v1122 = vpack.c.b16 %v1063, %v1062
    %v1123 = vpack.c.b16 %v1065, %v1064
    %v1124 = vpack.c.b16 %v1067, %v1066
    %v1125 = vpack.c.b16 %v1069, %v1068
    %v1126 = vpack.c.b16 %v1071, %v1070
    %v1127 = vpack.c.b16 %v1073, %v1072
    %v1128 = vpack.c.b16 %v1075, %v1074
    %v1129 = vpack.c.b16 %v1077, %v1076
    %v1130 = vpack.c.b16 %v1079, %v1078
    %v1131 = vpack.c.b16 %v1081, %v1080
    %v1132 = vpack.c.b16 %v1083, %v1082
    %v1133 = vpack.c.b16 %v1085, %v1084
    %v1134 = vpack.c.b16 %v1087, %v1086
    %v1135 = vpack.c.b16 %v1089, %v1088
    %v1136 = vpack.c.b16 %v1091, %v1090
    %v1137 = vpack.c.b16 %v1093, %v1092
    %v1138 = vpack.c.b16 %v1095, %v1094
    %v1139 = vpack.c.b16 %v1097, %v1096
    %v1140 = vpack.c.b16 %v1099, %v1098
    %v1141 = vpack.c.b16 %v1101, %v1100
    %1182 = vmatprep.subr.bf16.mxu0 0
    %1183 = vmatpush1.bf16.msra.mxu0 %v1102
    %1184 = vmatprep.subr.bf16.mxu0 0
    %1185 = vmatpush1.bf16.msra.mxu0 %v1103
    %1186 = vmatprep.subr.bf16.mxu0 0
    %1187 = vmatpush1.bf16.msra.mxu0 %v1104
    %1188 = vmatprep.subr.bf16.mxu0 0
    %1189 = vmatpush1.bf16.msra.mxu0 %v1105
    %1190 = vmatprep.subr.bf16.mxu0 0
    %1191 = vmatpush1.bf16.msra.mxu0 %v1106
    %1192 = vmatprep.subr.bf16.mxu0 0
    %1193 = vmatpush1.bf16.msra.mxu0 %v1107
    %1194 = vmatprep.subr.bf16.mxu0 0
    %1195 = vmatpush1.bf16.msra.mxu0 %v1108
    %1196 = vmatprep.subr.bf16.mxu0 0
    %1197 = vmatpush1.bf16.msra.mxu0 %v1109
    %1198 = vmatprep.subr.bf16.mxu0 0
    %1199 = vmatpush1.bf16.msra.mxu0 %v1110
    %1200 = vmatprep.subr.bf16.mxu0 0
    %1201 = vmatpush1.bf16.msra.mxu0 %v1111
    %1202 = vmatprep.subr.bf16.mxu0 0
    %1203 = vmatpush1.bf16.msra.mxu0 %v1112
    %1204 = vmatprep.subr.bf16.mxu0 0
    %1205 = vmatpush1.bf16.msra.mxu0 %v1113
    %1206 = vmatprep.subr.bf16.mxu0 0
    %1207 = vmatpush1.bf16.msra.mxu0 %v1114
    %1208 = vmatprep.subr.bf16.mxu0 0
    %1209 = vmatpush1.bf16.msra.mxu0 %v1115
    %1210 = vmatprep.subr.bf16.mxu0 0
    %1211 = vmatpush1.bf16.msra.mxu0 %v1116
    %1212 = vmatprep.subr.bf16.mxu0 0
    %1213 = vmatpush1.bf16.msra.mxu0 %v1117
    %1214 = vmatprep.mubr.bf16.mxu0 %v738
    %1215 = vmatmul.mubr.bf16.gmra.mrb[0].mxu0 %v706
    %v1216 = vpop.f32.mrb[0].mxu0
    %v1217 = vadd.f32 %v940, %v1216
    %v1218 = vpop.f32.mrb[0].mxu0
    %v1219 = vpop.f32.mrb[0].mxu0
    %v1220 = vadd.f32 %v940, %v1219
    %v1221 = vpop.f32.mrb[0].mxu0
    %1222 = vmatprep.mubr.bf16.mxu0 %v739
    %1223 = vmatmul.mubr.bf16.gmra.mrb[0].mxu0 %v707
    %v1224 = vpop.f32.mrb[0].mxu0
    %v1225 = vadd.f32 %v940, %v1224
    %v1226 = vpop.f32.mrb[0].mxu0
    %v1227 = vpop.f32.mrb[0].mxu0
    %v1228 = vadd.f32 %v940, %v1227
    %v1229 = vpop.f32.mrb[0].mxu0
    %1230 = vmatprep.mubr.bf16.mxu0 %v740
    %1231 = vmatmul.mubr.bf16.gmra.mrb[0].mxu0 %v708
    %v1232 = vpop.f32.mrb[0].mxu0
    %v1233 = vadd.f32 %v940, %v1232
    %v1234 = vpop.f32.mrb[0].mxu0
    %v1235 = vpop.f32.mrb[0].mxu0
    %v1236 = vadd.f32 %v940, %v1235
    %v1237 = vpop.f32.mrb[0].mxu0
    %1238 = vmatprep.mubr.bf16.mxu0 %v741
    %1239 = vmatmul.mubr.bf16.gmra.mrb[0].mxu0 %v709
    %v1240 = vpop.f32.mrb[0].mxu0
    %v1241 = vadd.f32 %v940, %v1240
    %v1242 = vpop.f32.mrb[0].mxu0
    %v1243 = vpop.f32.mrb[0].mxu0
    %v1244 = vadd.f32 %v940, %v1243
    %v1245 = vpop.f32.mrb[0].mxu0
    %1246 = vmatprep.mubr.bf16.mxu0 %v742
    %1247 = vmatmul.mubr.bf16.gmra.mrb[0].mxu0 %v710
    %v1248 = vpop.f32.mrb[0].mxu0
    %v1249 = vadd.f32 %v940, %v1248
    %v1250 = vpop.f32.mrb[0].mxu0
    %v1251 = vpop.f32.mrb[0].mxu0
    %v1252 = vadd.f32 %v940, %v1251
    %v1253 = vpop.f32.mrb[0].mxu0
    %1254 = vmatprep.mubr.bf16.mxu0 %v743
    %1255 = vmatmul.mubr.bf16.gmra.mrb[0].mxu0 %v711
    %v1256 = vpop.f32.mrb[0].mxu0
    %v1257 = vadd.f32 %v940, %v1256
    %v1258 = vpop.f32.mrb[0].mxu0
    %v1259 = vpop.f32.mrb[0].mxu0
    %v1260 = vadd.f32 %v940, %v1259
    %v1261 = vpop.f32.mrb[0].mxu0
    %1262 = vmatprep.mubr.bf16.mxu0 %v744
    %1263 = vmatmul.mubr.bf16.gmra.mrb[0].mxu0 %v712
    %v1264 = vpop.f32.mrb[0].mxu0
    %v1265 = vadd.f32 %v940, %v1264
    %v1266 = vpop.f32.mrb[0].mxu0
    %v1267 = vpop.f32.mrb[0].mxu0
    %v1268 = vadd.f32 %v940, %v1267
    %v1269 = vpop.f32.mrb[0].mxu0
    %1270 = vmatprep.mubr.bf16.mxu0 %v745
    %1271 = vmatmul.mubr.bf16.gmra.mrb[0].mxu0 %v713
    %v1272 = vpop.f32.mrb[0].mxu0
    %v1273 = vadd.f32 %v940, %v1272
    %v1274 = vpop.f32.mrb[0].mxu0
    %v1275 = vpop.f32.mrb[0].mxu0
    %v1276 = vadd.f32 %v940, %v1275
    %v1277 = vpop.f32.mrb[0].mxu0
    %1278 = vdwg.mxu0
    %1279 = vmatprep.subr.bf16.mxu0 0
    %1280 = vmatpush1.bf16.msra.mxu0 %v1118
    %1281 = vmatprep.subr.bf16.mxu0 0
    %1282 = vmatpush1.bf16.msra.mxu0 %v1119
    %1283 = vmatprep.subr.bf16.mxu0 0
    %1284 = vmatpush1.bf16.msra.mxu0 %v1120
    %1285 = vmatprep.subr.bf16.mxu0 0
    %1286 = vmatpush1.bf16.msra.mxu0 %v1121
    %1287 = vmatprep.subr.bf16.mxu0 0
    %1288 = vmatpush1.bf16.msra.mxu0 %v1122
    %1289 = vmatprep.subr.bf16.mxu0 0
    %1290 = vmatpush1.bf16.msra.mxu0 %v1123
    %1291 = vmatprep.subr.bf16.mxu0 0
    %1292 = vmatpush1.bf16.msra.mxu0 %v1124
    %1293 = vmatprep.subr.bf16.mxu0 0
    %1294 = vmatpush1.bf16.msra.mxu0 %v1125
    %1295 = vmatprep.subr.bf16.mxu0 0
    %1296 = vmatpush1.bf16.msra.mxu0 %v1126
    %1297 = vmatprep.subr.bf16.mxu0 0
    %1298 = vmatpush1.bf16.msra.mxu0 %v1127
    %1299 = vmatprep.subr.bf16.mxu0 0
    %1300 = vmatpush1.bf16.msra.mxu0 %v1128
    %1301 = vmatprep.subr.bf16.mxu0 0
    %1302 = vmatpush1.bf16.msra.mxu0 %v1129
    %1303 = vmatprep.subr.bf16.mxu0 0
    %1304 = vmatpush1.bf16.msra.mxu0 %v1130
    %1305 = vmatprep.subr.bf16.mxu0 0
    %1306 = vmatpush1.bf16.msra.mxu0 %v1131
    %1307 = vmatprep.subr.bf16.mxu0 0
    %1308 = vmatpush1.bf16.msra.mxu0 %v1132
    %1309 = vmatprep.subr.bf16.mxu0 0
    %1310 = vmatpush1.bf16.msra.mxu0 %v1133
    %1311 = vmatprep.mubr.bf16.mxu0 %v802
    %1312 = vmatmul.mubr.bf16.gmra.mrb[0].mxu0 %v770
    %v1313 = vpop.f32.mrb[0].mxu0
    %v1314 = vadd.f32 %v1217, %v1313
    %v1315 = vpop.f32.mrb[0].mxu0
    %v1316 = vpop.f32.mrb[0].mxu0
    %v1317 = vadd.f32 %v1220, %v1316
    %v1318 = vpop.f32.mrb[0].mxu0
    %1319 = vmatprep.mubr.bf16.mxu0 %v803
    %1320 = vmatmul.mubr.bf16.gmra.mrb[0].mxu0 %v771
    %v1321 = vpop.f32.mrb[0].mxu0
    %v1322 = vadd.f32 %v1225, %v1321
    %v1323 = vpop.f32.mrb[0].mxu0
    %v1324 = vpop.f32.mrb[0].mxu0
    %v1325 = vadd.f32 %v1228, %v1324
    %v1326 = vpop.f32.mrb[0].mxu0
    %1327 = vmatprep.mubr.bf16.mxu0 %v804
    %1328 = vmatmul.mubr.bf16.gmra.mrb[0].mxu0 %v772
    %v1329 = vpop.f32.mrb[0].mxu0
    %v1330 = vadd.f32 %v1233, %v1329
    %v1331 = vpop.f32.mrb[0].mxu0
    %v1332 = vpop.f32.mrb[0].mxu0
    %v1333 = vadd.f32 %v1236, %v1332
    %v1334 = vpop.f32.mrb[0].mxu0
    %1335 = vmatprep.mubr.bf16.mxu0 %v805
    %1336 = vmatmul.mubr.bf16.gmra.mrb[0].mxu0 %v773
    %v1337 = vpop.f32.mrb[0].mxu0
    %v1338 = vadd.f32 %v1241, %v1337
    %v1339 = vpop.f32.mrb[0].mxu0
    %v1340 = vpop.f32.mrb[0].mxu0
    %v1341 = vadd.f32 %v1244, %v1340
    %v1342 = vpop.f32.mrb[0].mxu0
    %1343 = vmatprep.mubr.bf16.mxu0 %v806
    %1344 = vmatmul.mubr.bf16.gmra.mrb[0].mxu0 %v774
    %v1345 = vpop.f32.mrb[0].mxu0
    %v1346 = vadd.f32 %v1249, %v1345
    %v1347 = vpop.f32.mrb[0].mxu0
    %v1348 = vpop.f32.mrb[0].mxu0
    %v1349 = vadd.f32 %v1252, %v1348
    %v1350 = vpop.f32.mrb[0].mxu0
    %1351 = vmatprep.mubr.bf16.mxu0 %v807
    %1352 = vmatmul.mubr.bf16.gmra.mrb[0].mxu0 %v775
    %v1353 = vpop.f32.mrb[0].mxu0
    %v1354 = vadd.f32 %v1257, %v1353
    %v1355 = vpop.f32.mrb[0].mxu0
    %v1356 = vpop.f32.mrb[0].mxu0
    %v1357 = vadd.f32 %v1260, %v1356
    %v1358 = vpop.f32.mrb[0].mxu0
    %1359 = vmatprep.mubr.bf16.mxu0 %v808
    %1360 = vmatmul.mubr.bf16.gmra.mrb[0].mxu0 %v776
    %v1361 = vpop.f32.mrb[0].mxu0
    %v1362 = vadd.f32 %v1265, %v1361
    %v1363 = vpop.f32.mrb[0].mxu0
    %v1364 = vpop.f32.mrb[0].mxu0
    %v1365 = vadd.f32 %v1268, %v1364
    %v1366 = vpop.f32.mrb[0].mxu0
    %1367 = vmatprep.mubr.bf16.mxu0 %v809
    %1368 = vmatmul.mubr.bf16.gmra.mrb[0].mxu0 %v777
    %v1369 = vpop.f32.mrb[0].mxu0
    %v1370 = vadd.f32 %v1273, %v1369
    %v1371 = vpop.f32.mrb[0].mxu0
    %v1372 = vpop.f32.mrb[0].mxu0
    %v1373 = vadd.f32 %v1276, %v1372
    %v1374 = vpop.f32.mrb[0].mxu0
    %1375 = vdwg.mxu0
    %1376 = vmatprep.subr.bf16.mxu0 0
    %1377 = vmatpush1.bf16.msra.mxu0 %v1134
    %1378 = vmatprep.subr.bf16.mxu0 0
    %1379 = vmatpush1.bf16.msra.mxu0 %v1135
    %1380 = vmatprep.subr.bf16.mxu0 0
    %1381 = vmatpush1.bf16.msra.mxu0 %v1136
    %1382 = vmatprep.subr.bf16.mxu0 0
    %1383 = vmatpush1.bf16.msra.mxu0 %v1137
    %1384 = vmatprep.subr.bf16.mxu0 0
    %1385 = vmatpush1.bf16.msra.mxu0 %v1138
    %1386 = vmatprep.subr.bf16.mxu0 0
    %1387 = vmatpush1.bf16.msra.mxu0 %v1139
    %1388 = vmatprep.subr.bf16.mxu0 0
    %1389 = vmatpush1.bf16.msra.mxu0 %v1140
    %1390 = vmatprep.subr.bf16.mxu0 0
    %1391 = vmatpush1.bf16.msra.mxu0 %v1141
    %1392 = vmatprep.subr.bf16.mxu0 0
    %1393 = vmatpush1.bf16.msra.mxu0 0
    %1394 = vmatprep.subr.bf16.mxu0 0
    %1395 = vmatpush1.bf16.msra.mxu0 0
    %1396 = vmatprep.subr.bf16.mxu0 0
    %1397 = vmatpush1.bf16.msra.mxu0 0
    %1398 = vmatprep.subr.bf16.mxu0 0
    %1399 = vmatpush1.bf16.msra.mxu0 0
    %1400 = vmatprep.subr.bf16.mxu0 0
    %1401 = vmatpush1.bf16.msra.mxu0 0
    %1402 = vmatprep.subr.bf16.mxu0 0
    %1403 = vmatpush1.bf16.msra.mxu0 0
    %1404 = vmatprep.subr.bf16.mxu0 0
    %1405 = vmatpush1.bf16.msra.mxu0 0
    %1406 = vmatprep.subr.bf16.mxu0 0
    %1407 = vmatpush1.bf16.msra.mxu0 0
    %1408 = vmatprep.mubr.bf16.mxu0 0
    %1409 = vmatmul.mubr.bf16.gmra.mrb[0].mxu0 %v834
    %v1410 = vpop.f32.mrb[0].mxu0
    %v1411 = vadd.f32 %v1314, %v1410
    %v1412 = vpop.f32.mrb[0].mxu0
    %v1413 = vpop.f32.mrb[0].mxu0
    %v1414 = vadd.f32 %v1317, %v1413
    %v1415 = vpop.f32.mrb[0].mxu0
    %1416 = vmatprep.mubr.bf16.mxu0 0
    %1417 = vmatmul.mubr.bf16.gmra.mrb[0].mxu0 %v835
    %v1418 = vpop.f32.mrb[0].mxu0
    %v1419 = vadd.f32 %v1322, %v1418
    %v1420 = vpop.f32.mrb[0].mxu0
    %v1421 = vpop.f32.mrb[0].mxu0
    %v1422 = vadd.f32 %v1325, %v1421
    %v1423 = vpop.f32.mrb[0].mxu0
    %1424 = vmatprep.mubr.bf16.mxu0 0
    %1425 = vmatmul.mubr.bf16.gmra.mrb[0].mxu0 %v836
    %v1426 = vpop.f32.mrb[0].mxu0
    %v1427 = vadd.f32 %v1330, %v1426
    %v1428 = vpop.f32.mrb[0].mxu0
    %v1429 = vpop.f32.mrb[0].mxu0
    %v1430 = vadd.f32 %v1333, %v1429
    %v1431 = vpop.f32.mrb[0].mxu0
    %1432 = vmatprep.mubr.bf16.mxu0 0
    %1433 = vmatmul.mubr.bf16.gmra.mrb[0].mxu0 %v837
    %v1434 = vpop.f32.mrb[0].mxu0
    %v1435 = vadd.f32 %v1338, %v1434
    %v1436 = vpop.f32.mrb[0].mxu0
    %v1437 = vpop.f32.mrb[0].mxu0
    %v1438 = vadd.f32 %v1341, %v1437
    %v1439 = vpop.f32.mrb[0].mxu0
    %1440 = vmatprep.mubr.bf16.mxu0 0
    %1441 = vmatmul.mubr.bf16.gmra.mrb[0].mxu0 %v838
    %v1442 = vpop.f32.mrb[0].mxu0
    %v1443 = vadd.f32 %v1346, %v1442
    %v1444 = vpop.f32.mrb[0].mxu0
    %v1445 = vpop.f32.mrb[0].mxu0
    %v1446 = vadd.f32 %v1349, %v1445
    %v1447 = vpop.f32.mrb[0].mxu0
    %1448 = vmatprep.mubr.bf16.mxu0 0
    %1449 = vmatmul.mubr.bf16.gmra.mrb[0].mxu0 %v839
    %v1450 = vpop.f32.mrb[0].mxu0
    %v1451 = vadd.f32 %v1354, %v1450
    %v1452 = vpop.f32.mrb[0].mxu0
    %v1453 = vpop.f32.mrb[0].mxu0
    %v1454 = vadd.f32 %v1357, %v1453
    %v1455 = vpop.f32.mrb[0].mxu0
    %1456 = vmatprep.mubr.bf16.mxu0 0
    %1457 = vmatmul.mubr.bf16.gmra.mrb[0].mxu0 %v840
    %v1458 = vpop.f32.mrb[0].mxu0
    %v1459 = vadd.f32 %v1362, %v1458
    %v1460 = vpop.f32.mrb[0].mxu0
    %v1461 = vpop.f32.mrb[0].mxu0
    %v1462 = vadd.f32 %v1365, %v1461
    %v1463 = vpop.f32.mrb[0].mxu0
    %1464 = vmatprep.mubr.bf16.mxu0 0
    %1465 = vmatmul.mubr.bf16.gmra.mrb[0].mxu0 %v841
    %v1466 = vpop.f32.mrb[0].mxu0
    %v1467 = vadd.f32 %v1370, %v1466
    %v1468 = vpop.f32.mrb[0].mxu0
    %v1469 = vpop.f32.mrb[0].mxu0
    %v1470 = vadd.f32 %v1373, %v1469
    %v1471 = vpop.f32.mrb[0].mxu0
    %1472 = vdwg.mxu0
    %v1473 = vmax.f32 %v1411, 0.0
    %v1474 = vmax.f32 %v1414, 0.0
    %v1475 = vmax.f32 %v1419, 0.0
    %v1476 = vmax.f32 %v1422, 0.0
    %v1477 = vmax.f32 %v1427, 0.0
    %v1478 = vmax.f32 %v1430, 0.0
    %v1479 = vmax.f32 %v1435, 0.0
    %v1480 = vmax.f32 %v1438, 0.0
    %v1481 = vmax.f32 %v1443, 0.0
    %v1482 = vmax.f32 %v1446, 0.0
    %v1483 = vmax.f32 %v1451, 0.0
    %v1484 = vmax.f32 %v1454, 0.0
    %v1485 = vmax.f32 %v1459, 0.0
    %v1486 = vmax.f32 %v1462, 0.0
    %v1487 = vmax.f32 %v1467, 0.0
    %v1488 = vmax.f32 %v1470, 0.0
    %v1489 = vsel %vm853, 1, 0
    %v1490 = vsel %vm854, 1, 0
    %vm1491 = vcmp.eq.s32.totalorder %v1489, 1
    %vm1492 = vcmp.eq.s32.totalorder %v1490, 1
    %v1493 = vsel %vm1491, %v1473, 0.0
    %v1494 = vsel %vm1492, %v1474, 0.0
    %v1495 = vsel %vm1491, %v1475, 0.0
    %v1496 = vsel %vm1492, %v1476, 0.0
    %v1497 = vsel %vm1491, %v1477, 0.0
    %v1498 = vsel %vm1492, %v1478, 0.0
    %v1499 = vsel %vm1491, %v1479, 0.0
    %v1500 = vsel %vm1492, %v1480, 0.0
    %v1501 = vsel %vm1491, %v1481, 0.0
    %v1502 = vsel %vm1492, %v1482, 0.0
    %v1503 = vsel %vm1491, %v1483, 0.0
    %v1504 = vsel %vm1492, %v1484, 0.0
    %v1505 = vsel %vm1491, %v1485, 0.0
    %v1506 = vsel %vm1492, %v1486, 0.0
    %v1507 = vsel %vm1491, %v1487, 0.0
    %v1508 = vsel %vm1492, %v1488, 0.0
    %v1509 = vmax.f32 %v1493, %v1494
    %v1510 = vrot.slane %v1509, 4
    %v1511 = vmax.f32 %v1509, %v1510
    %v1512 = vrot.slane %v1511, 2
    %v1513 = vmax.f32 %v1511, %v1512
    %v1514 = vrot.slane %v1513, 1
    %v1515 = vmax.f32 %v1513, %v1514
    %v1516 = vmax.f32 %v1495, %v1496
    %v1517 = vrot.slane %v1516, 4
    %v1518 = vmax.f32 %v1516, %v1517
    %v1519 = vrot.slane %v1518, 2
    %v1520 = vmax.f32 %v1518, %v1519
    %v1521 = vrot.slane %v1520, 1
    %v1522 = vmax.f32 %v1520, %v1521
    %v1523 = vmax.f32 %v1497, %v1498
    %v1524 = vrot.slane %v1523, 4
    %v1525 = vmax.f32 %v1523, %v1524
    %v1526 = vrot.slane %v1525, 2
    %v1527 = vmax.f32 %v1525, %v1526
    %v1528 = vrot.slane %v1527, 1
    %v1529 = vmax.f32 %v1527, %v1528
    %v1530 = vmax.f32 %v1499, %v1500
    %v1531 = vrot.slane %v1530, 4
    %v1532 = vmax.f32 %v1530, %v1531
    %v1533 = vrot.slane %v1532, 2
    %v1534 = vmax.f32 %v1532, %v1533
    %v1535 = vrot.slane %v1534, 1
    %v1536 = vmax.f32 %v1534, %v1535
    %v1537 = vmax.f32 %v1501, %v1502
    %v1538 = vrot.slane %v1537, 4
    %v1539 = vmax.f32 %v1537, %v1538
    %v1540 = vrot.slane %v1539, 2
    %v1541 = vmax.f32 %v1539, %v1540
    %v1542 = vrot.slane %v1541, 1
    %v1543 = vmax.f32 %v1541, %v1542
    %v1544 = vmax.f32 %v1503, %v1504
    %v1545 = vrot.slane %v1544, 4
    %v1546 = vmax.f32 %v1544, %v1545
    %v1547 = vrot.slane %v1546, 2
    %v1548 = vmax.f32 %v1546, %v1547
    %v1549 = vrot.slane %v1548, 1
    %v1550 = vmax.f32 %v1548, %v1549
    %v1551 = vmax.f32 %v1505, %v1506
    %v1552 = vrot.slane %v1551, 4
    %v1553 = vmax.f32 %v1551, %v1552
    %v1554 = vrot.slane %v1553, 2
    %v1555 = vmax.f32 %v1553, %v1554
    %v1556 = vrot.slane %v1555, 1
    %v1557 = vmax.f32 %v1555, %v1556
    %v1558 = vmax.f32 %v1507, %v1508
    %v1559 = vrot.slane %v1558, 4
    %v1560 = vmax.f32 %v1558, %v1559
    %v1561 = vrot.slane %v1560, 2
    %v1562 = vmax.f32 %v1560, %v1561
    %v1563 = vrot.slane %v1562, 1
    %v1564 = vmax.f32 %v1562, %v1563
    %vm1573 = vcmask 1041409
    %v1574 = vsel %vm1573, %v1522, %v1515
    %vm1575 = vcmask 1042434
    %v1576 = vsel %vm1575, %v1529, %v1574
    %vm1577 = vcmask 1043459
    %v1578 = vsel %vm1577, %v1536, %v1576
    %vm1579 = vcmask 1044484
    %v1580 = vsel %vm1579, %v1543, %v1578
    %vm1581 = vcmask 1045509
    %v1582 = vsel %vm1581, %v1550, %v1580
    %vm1583 = vcmask 1046534
    %v1584 = vsel %vm1583, %v1557, %v1582
    %vm1585 = vcmask 1047559
    %v1586 = vsel %vm1585, %v1564, %v1584
    %1588 = vst [vmem:[#allocation2] sm:$0xff] %v1586
    %v1589 = vld [vmem:[#allocation2] sm:$0xff]
    %v1590 = vpack.c.bf16 %v1589, %v1589
    %v1591 = vld [vmem:[#allocation5] sm:$0xff]
    %v1592 = vld [vmem:[#allocation5 + $0x8] sm:$0xff]
    %v1593 = vld [vmem:[#allocation5 + $0x10] sm:$0xff]
    %v1594 = vld [vmem:[#allocation5 + $0x18] sm:$0xff]
    %v1595 = vld [vmem:[#allocation5 + $0x20] sm:$0xff]
    %v1596 = vld [vmem:[#allocation5 + $0x28] sm:$0xff]
    %v1597 = vld [vmem:[#allocation5 + $0x30] sm:$0xff]
    %v1598 = vld [vmem:[#allocation5 + $0x38] sm:$0xff]
    %v1599 = vld [vmem:[#allocation5 + $0x40] sm:$0xff]
    %v1600 = vld [vmem:[#allocation5 + $0x48] sm:$0xff]
    %v1601 = vld [vmem:[#allocation5 + $0x50] sm:$0xff]
    %v1602 = vld [vmem:[#allocation5 + $0x58] sm:$0xff]
    %v1603 = vld [vmem:[#allocation5 + $0x60] sm:$0xff]
    %v1604 = vld [vmem:[#allocation5 + $0x68] sm:$0xff]
    %v1605 = vld [vmem:[#allocation5 + $0x70] sm:$0xff]
    %v1606 = vld [vmem:[#allocation5 + $0x78] sm:$0xff]
    %v1607 = vld [vmem:[#allocation7] sm:$0x3]
    %v1609 = vlaneseq
    %v1610 = vshrl.u32 %v1609, 7
    %v1611 = vsub.s32 0, %v1610
    %v1612 = vrot.slane %v1607, %v1611
    %v1613 = vlaneseq
    %v1614 = vshrl.u32 %v1613, 7
    %v1615 = vsub.s32 1, %v1614
    %v1616 = vrot.slane %v1607, %v1615
    %v1635 = vunpack.c.l.b16 %v1591
    %v1636 = vunpack.c.h.b16 %v1591
    %v1637 = vunpack.c.l.b16 %v1592
    %v1638 = vunpack.c.h.b16 %v1592
    %v1639 = vunpack.c.l.b16 %v1593
    %v1640 = vunpack.c.h.b16 %v1593
    %v1641 = vunpack.c.l.b16 %v1594
    %v1642 = vunpack.c.h.b16 %v1594
    %v1643 = vunpack.c.l.b16 %v1595
    %v1644 = vunpack.c.h.b16 %v1595
    %v1645 = vunpack.c.l.b16 %v1596
    %v1646 = vunpack.c.h.b16 %v1596
    %v1647 = vunpack.c.l.b16 %v1597
    %v1648 = vunpack.c.h.b16 %v1597
    %v1649 = vunpack.c.l.b16 %v1598
    %v1650 = vunpack.c.h.b16 %v1598
    %v1651 = vunpack.c.l.b16 %v1599
    %v1652 = vunpack.c.h.b16 %v1599
    %v1653 = vunpack.c.l.b16 %v1600
    %v1654 = vunpack.c.h.b16 %v1600
    %v1655 = vunpack.c.l.b16 %v1601
    %v1656 = vunpack.c.h.b16 %v1601
    %v1657 = vunpack.c.l.b16 %v1602
    %v1658 = vunpack.c.h.b16 %v1602
    %v1659 = vunpack.c.l.b16 %v1603
    %v1660 = vunpack.c.h.b16 %v1603
    %v1661 = vunpack.c.l.b16 %v1604
    %v1662 = vunpack.c.h.b16 %v1604
    %v1663 = vunpack.c.l.b16 %v1605
    %v1664 = vunpack.c.h.b16 %v1605
    %v1665 = vunpack.c.l.b16 %v1606
    %v1666 = vunpack.c.h.b16 %v1606
    %v1667 = vpack.c.b16 %v1637, %v1635
    %v1668 = vpack.c.b16 %v1638, %v1636
    %v1669 = vpack.c.b16 %v1641, %v1639
    %v1670 = vpack.c.b16 %v1642, %v1640
    %v1671 = vpack.c.b16 %v1645, %v1643
    %v1672 = vpack.c.b16 %v1646, %v1644
    %v1673 = vpack.c.b16 %v1649, %v1647
    %v1674 = vpack.c.b16 %v1650, %v1648
    %v1675 = vpack.c.b16 %v1653, %v1651
    %v1676 = vpack.c.b16 %v1654, %v1652
    %v1677 = vpack.c.b16 %v1657, %v1655
    %v1678 = vpack.c.b16 %v1658, %v1656
    %v1679 = vpack.c.b16 %v1661, %v1659
    %v1680 = vpack.c.b16 %v1662, %v1660
    %v1681 = vpack.c.b16 %v1665, %v1663
    %v1682 = vpack.c.b16 %v1666, %v1664
    %1699 = vmatprep.subr.bf16.mxu0 %v1668
    %1700 = vmatpush1.bf16.msra.mxu0 %v1667
    %1701 = vmatprep.subr.bf16.mxu0 %v1670
    %1702 = vmatpush1.bf16.msra.mxu0 %v1669
    %1703 = vmatprep.subr.bf16.mxu0 %v1672
    %1704 = vmatpush1.bf16.msra.mxu0 %v1671
    %1705 = vmatprep.subr.bf16.mxu0 %v1674
    %1706 = vmatpush1.bf16.msra.mxu0 %v1673
    %1707 = vmatprep.subr.bf16.mxu0 %v1676
    %1708 = vmatpush1.bf16.msra.mxu0 %v1675
    %1709 = vmatprep.subr.bf16.mxu0 %v1678
    %1710 = vmatpush1.bf16.msra.mxu0 %v1677
    %1711 = vmatprep.subr.bf16.mxu0 %v1680
    %1712 = vmatpush1.bf16.msra.mxu0 %v1679
    %1713 = vmatprep.subr.bf16.mxu0 %v1682
    %1714 = vmatpush1.bf16.msra.mxu0 %v1681
    %1715 = vmatprep.subr.bf16.mxu0 0
    %1716 = vmatpush1.bf16.msra.mxu0 0
    %1717 = vmatprep.subr.bf16.mxu0 0
    %1718 = vmatpush1.bf16.msra.mxu0 0
    %1719 = vmatprep.subr.bf16.mxu0 0
    %1720 = vmatpush1.bf16.msra.mxu0 0
    %1721 = vmatprep.subr.bf16.mxu0 0
    %1722 = vmatpush1.bf16.msra.mxu0 0
    %1723 = vmatprep.subr.bf16.mxu0 0
    %1724 = vmatpush1.bf16.msra.mxu0 0
    %1725 = vmatprep.subr.bf16.mxu0 0
    %1726 = vmatpush1.bf16.msra.mxu0 0
    %1727 = vmatprep.subr.bf16.mxu0 0
    %1728 = vmatpush1.bf16.msra.mxu0 0
    %1729 = vmatprep.subr.bf16.mxu0 0
    %1730 = vmatpush1.bf16.msra.mxu0 0
    %1731 = vmatprep.mubr.bf16.mxu0 0
    %1732 = vmatmul.mubr.bf16.gmra.mrb[0].mxu0 %v1590
    %v1733 = vpop.f32.mrb[0].mxu0
    %v1734 = vadd.f32 %v1612, %v1733
    %v1735 = vpop.f32.mrb[0].mxu0
    %v1736 = vadd.f32 %v1616, %v1735
    %v1737 = vpop.f32.mrb[0].mxu0
    %v1738 = vpop.f32.mrb[0].mxu0
    %1739 = vdwg.mxu0
    %v1740 = vmax.f32 %v1734, 0.0
    %v1741 = vmax.f32 %v1736, 0.0
    %v1742 = vpack.c.bf16 %v1740, %v1740
    %v1743 = vpack.c.bf16 %v1741, %v1741
    %v1744 = vld [vmem:[%s5] sm:$0xf]
    %v1745 = vld [vmem:[%s5 + $0x4] sm:$0xf]
    %v1746 = vld [vmem:[%s5 + $0x8] sm:$0xf]
    %v1747 = vld [vmem:[%s5 + $0xc] sm:$0xf]
    %v1748 = vld [vmem:[%s5 + $0x10] sm:$0xf]
    %v1749 = vld [vmem:[%s5 + $0x14] sm:$0xf]
    %v1750 = vld [vmem:[%s5 + $0x18] sm:$0xf]
    %v1751 = vld [vmem:[%s5 + $0x1c] sm:$0xf]
    %v1752 = vld [vmem:[%s5 + $0x20] sm:$0xf]
    %v1753 = vld [vmem:[%s5 + $0x24] sm:$0xf]
    %v1754 = vld [vmem:[%s5 + $0x28] sm:$0xf]
    %v1755 = vld [vmem:[%s5 + $0x2c] sm:$0xf]
    %v1756 = vld [vmem:[%s5 + $0x30] sm:$0xf]
    %v1757 = vld [vmem:[%s5 + $0x34] sm:$0xf]
    %v1758 = vld [vmem:[%s5 + $0x38] sm:$0xf]
    %v1759 = vld [vmem:[%s5 + $0x3c] sm:$0xf]
    %v1760 = vld [vmem:[%s5 + $0x40] sm:$0xf]
    %v1761 = vld [vmem:[%s5 + $0x44] sm:$0xf]
    %v1762 = vld [vmem:[%s5 + $0x48] sm:$0xf]
    %v1763 = vld [vmem:[%s5 + $0x4c] sm:$0xf]
    %v1764 = vld [vmem:[%s5 + $0x50] sm:$0xf]
    %v1765 = vld [vmem:[%s5 + $0x54] sm:$0xf]
    %v1766 = vld [vmem:[%s5 + $0x58] sm:$0xf]
    %v1767 = vld [vmem:[%s5 + $0x5c] sm:$0xf]
    %v1768 = vld [vmem:[%s5 + $0x60] sm:$0xf]
    %v1769 = vld [vmem:[%s5 + $0x64] sm:$0xf]
    %v1770 = vld [vmem:[%s5 + $0x68] sm:$0xf]
    %v1771 = vld [vmem:[%s5 + $0x6c] sm:$0xf]
    %v1772 = vld [vmem:[%s5 + $0x70] sm:$0xf]
    %v1773 = vld [vmem:[%s5 + $0x74] sm:$0xf]
    %v1774 = vld [vmem:[%s5 + $0x78] sm:$0xf]
    %v1775 = vld [vmem:[%s5 + $0x7c] sm:$0xf]
    %v1776 = vld [vmem:[%s6] sm:$0x1]
    %v1778 = vlaneseq
    %v1779 = vshrl.u32 %v1778, 7
    %v1780 = vsub.s32 0, %v1779
    %v1781 = vrot.slane %v1776, %v1780
    %v1815 = vunpack.c.l.b16 %v1744
    %v1816 = vunpack.c.l.b16 %v1745
    %v1817 = vunpack.c.l.b16 %v1746
    %v1818 = vunpack.c.l.b16 %v1747
    %v1819 = vunpack.c.l.b16 %v1748
    %v1820 = vunpack.c.l.b16 %v1749
    %v1821 = vunpack.c.l.b16 %v1750
    %v1822 = vunpack.c.l.b16 %v1751
    %v1823 = vunpack.c.l.b16 %v1752
    %v1824 = vunpack.c.l.b16 %v1753
    %v1825 = vunpack.c.l.b16 %v1754
    %v1826 = vunpack.c.l.b16 %v1755
    %v1827 = vunpack.c.l.b16 %v1756
    %v1828 = vunpack.c.l.b16 %v1757
    %v1829 = vunpack.c.l.b16 %v1758
    %v1830 = vunpack.c.l.b16 %v1759
    %v1831 = vunpack.c.l.b16 %v1760
    %v1832 = vunpack.c.l.b16 %v1761
    %v1833 = vunpack.c.l.b16 %v1762
    %v1834 = vunpack.c.l.b16 %v1763
    %v1835 = vunpack.c.l.b16 %v1764
    %v1836 = vunpack.c.l.b16 %v1765
    %v1837 = vunpack.c.l.b16 %v1766
    %v1838 = vunpack.c.l.b16 %v1767
    %v1839 = vunpack.c.l.b16 %v1768
    %v1840 = vunpack.c.l.b16 %v1769
    %v1841 = vunpack.c.l.b16 %v1770
    %v1842 = vunpack.c.l.b16 %v1771
    %v1843 = vunpack.c.l.b16 %v1772
    %v1844 = vunpack.c.l.b16 %v1773
    %v1845 = vunpack.c.l.b16 %v1774
    %v1846 = vunpack.c.l.b16 %v1775
    %v1847 = vpack.c.b16 %v1816, %v1815
    %v1848 = vpack.c.b16 %v1818, %v1817
    %v1849 = vpack.c.b16 %v1820, %v1819
    %v1850 = vpack.c.b16 %v1822, %v1821
    %v1851 = vpack.c.b16 %v1824, %v1823
    %v1852 = vpack.c.b16 %v1826, %v1825
    %v1853 = vpack.c.b16 %v1828, %v1827
    %v1854 = vpack.c.b16 %v1830, %v1829
    %v1855 = vpack.c.b16 %v1832, %v1831
    %v1856 = vpack.c.b16 %v1834, %v1833
    %v1857 = vpack.c.b16 %v1836, %v1835
    %v1858 = vpack.c.b16 %v1838, %v1837
    %v1859 = vpack.c.b16 %v1840, %v1839
    %v1860 = vpack.c.b16 %v1842, %v1841
    %v1861 = vpack.c.b16 %v1844, %v1843
    %v1862 = vpack.c.b16 %v1846, %v1845
    %1879 = vmatprep.subr.bf16.mxu0 0
    %1880 = vmatpush1.bf16.msra.mxu0 %v1847
    %1881 = vmatprep.subr.bf16.mxu0 0
    %1882 = vmatpush1.bf16.msra.mxu0 %v1848
    %1883 = vmatprep.subr.bf16.mxu0 0
    %1884 = vmatpush1.bf16.msra.mxu0 %v1849
    %1885 = vmatprep.subr.bf16.mxu0 0
    %1886 = vmatpush1.bf16.msra.mxu0 %v1850
    %1887 = vmatprep.subr.bf16.mxu0 0
    %1888 = vmatpush1.bf16.msra.mxu0 %v1851
    %1889 = vmatprep.subr.bf16.mxu0 0
    %1890 = vmatpush1.bf16.msra.mxu0 %v1852
    %1891 = vmatprep.subr.bf16.mxu0 0
    %1892 = vmatpush1.bf16.msra.mxu0 %v1853
    %1893 = vmatprep.subr.bf16.mxu0 0
    %1894 = vmatpush1.bf16.msra.mxu0 %v1854
    %1895 = vmatprep.subr.bf16.mxu0 0
    %1896 = vmatpush1.bf16.msra.mxu0 %v1855
    %1897 = vmatprep.subr.bf16.mxu0 0
    %1898 = vmatpush1.bf16.msra.mxu0 %v1856
    %1899 = vmatprep.subr.bf16.mxu0 0
    %1900 = vmatpush1.bf16.msra.mxu0 %v1857
    %1901 = vmatprep.subr.bf16.mxu0 0
    %1902 = vmatpush1.bf16.msra.mxu0 %v1858
    %1903 = vmatprep.subr.bf16.mxu0 0
    %1904 = vmatpush1.bf16.msra.mxu0 %v1859
    %1905 = vmatprep.subr.bf16.mxu0 0
    %1906 = vmatpush1.bf16.msra.mxu0 %v1860
    %1907 = vmatprep.subr.bf16.mxu0 0
    %1908 = vmatpush1.bf16.msra.mxu0 %v1861
    %1909 = vmatprep.subr.bf16.mxu0 0
    %1910 = vmatpush1.bf16.msra.mxu0 %v1862
    %1911 = vmatprep.mubr.bf16.mxu0 %v1743
    %1912 = vmatmul.mubr.bf16.gmra.mrb[0].mxu0 %v1742
    %v1913 = vpop.f32.mrb[0].mxu0
    %v1914 = vadd.f32 %v1781, %v1913
    %v1915 = vpop.f32.mrb[0].mxu0
    %v1916 = vpop.f32.mrb[0].mxu0
    %v1917 = vpop.f32.mrb[0].mxu0
    %1918 = vdwg.mxu0
    %v1919 = vmax.f32 %v1914, 0.0
    %v1920 = vpack.c.bf16 %v1919, %v1919
    %v1921 = vld [vmem:[%s7] sm:$0xf]
    %v1922 = vld [vmem:[%s7 + $0x4] sm:$0xf]
    %v1923 = vld [vmem:[%s7 + $0x8] sm:$0xf]
    %v1924 = vld [vmem:[%s7 + $0xc] sm:$0xf]
    %v1925 = vld [vmem:[%s8] sm:$0x1]
    %v1927 = vlaneseq
    %v1928 = vshrl.u32 %v1927, 7
    %v1929 = vsub.s32 0, %v1928
    %v1930 = vrot.slane %v1925, %v1929
    %v1936 = vunpack.c.l.b16 %v1921
    %v1937 = vunpack.c.l.b16 %v1922
    %v1938 = vunpack.c.l.b16 %v1923
    %v1939 = vunpack.c.l.b16 %v1924
    %v1940 = vpack.c.b16 %v1937, %v1936
    %v1941 = vpack.c.b16 %v1939, %v1938
    %vm1944 = vcmask 261120
    %v1946 = vsel %vm1944, %v1920, 0
    %1948 = vmatprep.subr.bf16.mxu0 0
    %1949 = vmatpush1.bf16.msra.mxu0 %v1940
    %1950 = vmatprep.subr.bf16.mxu0 0
    %1951 = vmatpush1.bf16.msra.mxu0 %v1941
    %1952 = vmatprep.subr.bf16.mxu0 0
    %1953 = vmatpush1.bf16.msra.mxu0 0
    %1954 = vmatprep.subr.bf16.mxu0 0
    %1955 = vmatpush1.bf16.msra.mxu0 0
    %1956 = vmatprep.subr.bf16.mxu0 0
    %1957 = vmatpush1.bf16.msra.mxu0 0
    %1958 = vmatprep.subr.bf16.mxu0 0
    %1959 = vmatpush1.bf16.msra.mxu0 0
    %1960 = vmatprep.subr.bf16.mxu0 0
    %1961 = vmatpush1.bf16.msra.mxu0 0
    %1962 = vmatprep.subr.bf16.mxu0 0
    %1963 = vmatpush1.bf16.msra.mxu0 0
    %1964 = vmatprep.subr.bf16.mxu0 0
    %1965 = vmatpush1.bf16.msra.mxu0 0
    %1966 = vmatprep.subr.bf16.mxu0 0
    %1967 = vmatpush1.bf16.msra.mxu0 0
    %1968 = vmatprep.subr.bf16.mxu0 0
    %1969 = vmatpush1.bf16.msra.mxu0 0
    %1970 = vmatprep.subr.bf16.mxu0 0
    %1971 = vmatpush1.bf16.msra.mxu0 0
    %1972 = vmatprep.subr.bf16.mxu0 0
    %1973 = vmatpush1.bf16.msra.mxu0 0
    %1974 = vmatprep.subr.bf16.mxu0 0
    %1975 = vmatpush1.bf16.msra.mxu0 0
    %1976 = vmatprep.subr.bf16.mxu0 0
    %1977 = vmatpush1.bf16.msra.mxu0 0
    %1978 = vmatprep.subr.bf16.mxu0 0
    %1979 = vmatpush1.bf16.msra.mxu0 0
    %1980 = vmatprep.mubr.bf16.mxu0 0
    %1981 = vmatmul.mubr.bf16.gmra.mrb[0].mxu0 %v1946
    %v1982 = vpop.f32.mrb[0].mxu0
    %v1983 = vadd.f32 %v1930, %v1982
    %v1984 = vpop.f32.mrb[0].mxu0
    %v1985 = vpop.f32.mrb[0].mxu0
    %v1986 = vpop.f32.mrb[0].mxu0
    %1987 = vdwg.mxu0
    %1988 = vmax.xlane.f32.xlu0 %v1983
    %v1989 = vpop.xlane.xlu0 %1988
    %v1990 = vsub.f32 %v1983, %v1989
    %v1991 = vmul.f32 %v1990, 1.442695
    %v1992 = vpow.pop %v1991
    %1993 = vadd.xlane.f32.xlu0 %v1992
    %v1994 = vpop.xlane.xlu0 %1993
    %v1995 = vlog2.pop %v1994
    %v1996 = vmul.f32 %v1995, 0.6931472
    %v1997 = vsub.f32 %v1990, %v1996
    %1998 = vst [vmem:[%s9] sm:$0xff] %v1997
    // Predicated region
    $region50: #{convnet_forward.1} parent=1 // pred_check
      _
    $region51: #{convnet_forward.1} parent=1 // pred_check_branch
      %2000 = sbr.rel (0) target = $region53
    $region52: #{convnet_forward.1} parent=1 // pred_region
      _
    $region53: #{convnet_forward.1} parent=1 // pred_fallthru
      _
    // Predicated region
    $region54: #{convnet_forward.1} parent=1 // pred_check
      _
    $region55: #{convnet_forward.1} parent=1 // pred_check_branch
      %2002 = sbr.rel (0) target = $region57
    $region56: #{convnet_forward.1} parent=1 // pred_region
      _
    $region57: #{convnet_forward.1} parent=1 // pred_fallthru
      _
    %2003 = vsyncpa [#allocation4], 1
    %2004 = vsyncpa [#allocation6], 1

</llo_original>
